<compile_context>
chip_gen: v6e
topology: v6e:2x2x1
jax: 0.10.0
libtpu: 0.0.40
codegen_flags: <defaults>
</compile_context>

<pallas_src>
import jax
import jax.numpy as jnp
from jax import lax
from jax.experimental import pallas as pl
from jax.experimental.pallas import tpu as pltpu


def _out_rows(action_n):
    # logits (action_n) + value (1), padded up to a multiple of 8 sublanes so
    # the output block is a clean (8, tm)-aligned tile (unmasked stores).
    return ((action_n + 1 + 7) // 8) * 8


# --------------------------------------------------------------------------
# Pallas kernel: full conv trunk + fused policy|value heads for one row tile.
# Channel-major layout: activations are (C, TM) with rows on the 128-lane axis.
# --------------------------------------------------------------------------
def _net_kernel(xcol_ref, w1_ref, b64_ref, wtrunk_ref,
                wh1_ref, wh2_ref, wh3_ref, bh12_ref, bh3_ref, out_ref):
    f32 = jnp.float32
    bf16 = jnp.bfloat16

    def mm(w, h):                         # bf16 MXU matmul, f32 accumulate
        return jnp.dot(w, h, preferred_element_type=f32)

    def act(t):                           # bias+relu in f32, single bf16 cast
        return jnp.maximum(t, 0.0).astype(bf16)

    # conv1 (2x2, dilation 2) on the VPU: 4 outer-product FMAs over the taps
    # (a K=4 MXU matmul would waste a push pass).
    xcol = xcol_ref[...].astype(f32)                       # (4, TM) f32
    w1 = w1_ref[...]                                       # (64, 4) f32
    x1f = (w1[:, 0:1] * xcol[0:1, :] + w1[:, 1:2] * xcol[1:2, :]
           + w1[:, 2:3] * xcol[2:3, :] + w1[:, 3:4] * xcol[3:4, :]
           + b64_ref[0])
    x1 = act(x1f)                                          # (64, TM) bf16

    # trunk: conv2 / conv3 / conv4 (1x1 convs == matmuls); residual in bf16
    x2 = act(mm(wtrunk_ref[0], x1) + b64_ref[1])
    x3 = act(mm(wtrunk_ref[1], x2) + b64_ref[2])
    x4 = act(mm(wtrunk_ref[2], x3 + x1) + b64_ref[3])

    # fused policy|value heads: 64 -> 128 -> 128 -> OUT_ROWS (lane-dense out)
    h1 = act(mm(wh1_ref[...], x4) + bh12_ref[0])           # (128, TM)
    h2 = act(mm(wh2_ref[...], h1) + bh12_ref[1])           # (128, TM)
    out_ref[...] = mm(wh3_ref[...], h2) + bh3_ref[...]     # (OUT_ROWS, TM) f32
    # rows [0:A] = policy logits, row A = value, rows A+1.. = exact zeros


# --------------------------------------------------------------------------
# pallas_call wrapper
# --------------------------------------------------------------------------
def _pick_tile(m, max_tile=8192):
    # Biggest tile that divides M, prefers an EVEN grid count (v7x has 2
    # TensorCores sharing the "parallel" axis), and stays <= max_tile.
    # bf16 activations keep the live footprint ~<= 12 MiB even at 8192, which
    # fits the explicit 48 MiB scoped-VMEM limit on v5e/v6e/v7x.
    candidates = [t for t in (8192, 4096, 2048, 1024, 512, 256, 128) if t <= max_tile]
    for t in candidates:                        # pass 1: even grid count
        if m % t == 0 and (m // t) % 2 == 0:
            return t
    for t in candidates:                        # pass 2: at least 2 steps
        if m % t == 0 and m // t >= 2:
            return t
    for t in candidates:                        # pass 3: any divisor
        if m % t == 0:
            return t
    return m                                    # block == full dim, always legal


def run_net(xcolT, kparams, action_n):
    """xcolT: (4, M) bf16 im2col taps (channel-major). Returns (OUT_ROWS, M) f32."""
    M = xcolT.shape[1]
    tm = _pick_tile(M)
    w1t, b64, wtrunk_t, wh1t, wh2t, wh3t, bh12, bh3 = kparams
    out_rows = wh3t.shape[0]

    in_specs = [
        pl.BlockSpec((4, tm), lambda i: (0, i)),
        pl.BlockSpec(w1t.shape, lambda i: (0, 0)),
        pl.BlockSpec(b64.shape, lambda i: (0, 0, 0)),
        pl.BlockSpec(wtrunk_t.shape, lambda i: (0, 0, 0)),
        pl.BlockSpec(wh1t.shape, lambda i: (0, 0)),
        pl.BlockSpec(wh2t.shape, lambda i: (0, 0)),
        pl.BlockSpec(wh3t.shape, lambda i: (0, 0)),
        pl.BlockSpec(bh12.shape, lambda i: (0, 0, 0)),
        pl.BlockSpec(bh3.shape, lambda i: (0, 0)),
    ]
    out_spec = pl.BlockSpec((out_rows, tm), lambda i: (0, i))
    out_shape = jax.ShapeDtypeStruct((out_rows, M), jnp.float32)

    # Advisory cost so XLA overlaps the surrounding rot90/pad/softmax glue.
    flops_per_row = 2 * (4 * 64 + 3 * 64 * 64 + 64 * 128 + 128 * 128 + 128 * out_rows)
    weight_bytes = sum(int(a.size) * a.dtype.itemsize
                       for a in (w1t, b64, wtrunk_t, wh1t, wh2t, wh3t, bh12, bh3))
    cost = pl.CostEstimate(
        flops=flops_per_row * M,
        transcendentals=0,
        bytes_accessed=int(xcolT.size) * 2 + out_rows * M * 4 + weight_bytes)

    return pl.pallas_call(
        _net_kernel,
        out_shape=out_shape,
        grid_spec=pltpu.PrefetchScalarGridSpec(
            num_scalar_prefetch=0,
            grid=(M // tm,),
            in_specs=in_specs,
            out_specs=out_spec),
        compiler_params=pltpu.CompilerParams(
            dimension_semantics=("parallel",),
            vmem_limit_bytes=48 * 1024 * 1024),
        cost_estimate=cost,
    )(xcolT, w1t, b64, wtrunk_t, wh1t, wh2t, wh3t, bh12, bh3)


# --------------------------------------------------------------------------
# Parameters (deterministic orthogonal-style init like nn.init.orthogonal)
# --------------------------------------------------------------------------
def _orthogonal(key, rows, cols):
    if rows >= cols:
        a = jax.random.normal(key, (rows, cols), dtype=jnp.float32)
        q, _ = jnp.linalg.qr(a)
        return q
    a = jax.random.normal(key, (cols, rows), dtype=jnp.float32)
    q, _ = jnp.linalg.qr(a)
    return q.T


def init_params(key, action_n):
    # conv weights stored as (C_in_flat, C_out); biases (1, C_out) = 0.
    # conv1 tap order (kh,kw)=(0,0),(0,1),(1,0),(1,1) matches the im2col
    # offsets (0,0),(0,2),(2,0),(2,2) used in ppo_forward (dilation 2).
    dims = [(4, 64), (64, 64), (64, 64), (64, 64),          # conv1..conv4
            (64, 64), (64, 64), (64, action_n),             # conv4p, conv5p, conv6p
            (64, 64), (64, 64), (64, 1)]                    # conv4v, conv5v, conv6v
    keys = jax.random.split(key, len(dims))
    params = []
    for k, (cin, cout) in zip(keys, dims):
        w = _orthogonal(k, cin, cout).astype(jnp.float32)
        b = jnp.zeros((1, cout), jnp.float32)
        params.append((w, b))
    return params


def pack_params(params, action_n):
    """Pack the 10 (w, b) pairs into 9 kernel arrays.

    Weights are pre-transposed (channel-major layout) and cast to bf16; the
    two heads are fused into 128-wide matmuls with exact-zero off-diagonal
    blocks (bit-compatible with the unfused heads)."""
    ((w1, b1), (w2, b2), (w3, b3), (w4, b4),
     (w4p, b4p), (w5p, b5p), (w6p, b6p),
     (w4v, b4v), (w5v, b5v), (w6v, b6v)) = params
    A = action_n
    out_rows = _out_rows(A)
    bf16 = jnp.bfloat16
    col = lambda b: b.reshape(-1, 1)                                 # (1,C)->(C,1)

    w1t = w1.T.astype(jnp.float32)                                   # (64, 4)  f32 (VPU conv1)
    b64 = jnp.stack([col(b1), col(b2), col(b3), col(b4)], axis=0)    # (4, 64, 1) f32
    wtrunk_t = jnp.stack([w2.T, w3.T, w4.T], axis=0).astype(bf16)    # (3, 64, 64)

    wh1t = jnp.concatenate([w4p.T, w4v.T], axis=0).astype(bf16)      # (128, 64)
    wh2t = jnp.zeros((128, 128), jnp.float32)
    wh2t = wh2t.at[:64, :64].set(w5p.T).at[64:, 64:].set(w5v.T).astype(bf16)
    wh3t = jnp.zeros((out_rows, 128), jnp.float32)
    wh3t = wh3t.at[:A, :64].set(w6p.T).at[A, 64:].set(w6v[:, 0]).astype(bf16)
    bh12 = jnp.stack([jnp.concatenate([col(b4p), col(b4v)], axis=0),
                      jnp.concatenate([col(b5p), col(b5v)], axis=0)], axis=0)  # (2,128,1)
    bh3 = jnp.zeros((out_rows, 1), jnp.float32)
    bh3 = bh3.at[:A, 0].set(b6p[0]).at[A, 0].set(b6v[0, 0])

    return (w1t, b64, wtrunk_t, wh1t, wh2t, wh3t, bh12, bh3)


# --------------------------------------------------------------------------
# Pure-JAX reference for the same math (validates the Pallas lowering; uses
# identical bf16 cast points and channel-major layout).
# --------------------------------------------------------------------------
def _net_ref(xcolT, kparams):
    w1t, b64, wtrunk_t, wh1t, wh2t, wh3t, bh12, bh3 = kparams
    f32, bf16 = jnp.float32, jnp.bfloat16
    mm = lambda w, h: jnp.dot(w, h, preferred_element_type=f32)
    act = lambda t: jnp.maximum(t, 0.0).astype(bf16)

    xcol = xcolT.astype(f32)
    x1f = (w1t[:, 0:1] * xcol[0:1, :] + w1t[:, 1:2] * xcol[1:2, :]
           + w1t[:, 2:3] * xcol[2:3, :] + w1t[:, 3:4] * xcol[3:4, :] + b64[0])
    x1 = act(x1f)
    x2 = act(mm(wtrunk_t[0], x1) + b64[1])
    x3 = act(mm(wtrunk_t[1], x2) + b64[2])
    x4 = act(mm(wtrunk_t[2], x3 + x1) + b64[3])
    h1 = act(mm(wh1t, x4) + bh12[0])
    h2 = act(mm(wh2t, h1) + bh12[1])
    return mm(wh3t, h2) + bh3


# --------------------------------------------------------------------------
# Full forward (matches PPO.forward): 4 rotated copies, reflect pad, network,
# inverse rotations, mean over branches, softmax over the action channel.
# --------------------------------------------------------------------------
def _im2col_taps(x2d, H, W):
    # four rotation copies (torch.rot90 k = 1, 2, 3, 0 on the H/W plane)
    xs = jnp.stack([jnp.rot90(x2d, k, axes=(1, 2)) for k in (1, 2, 3, 0)], axis=0)
    # F.pad(x, (0, 2, 0, 2), mode='reflect'): pad bottom/right by 2, reflected
    xpad = jnp.pad(xs, ((0, 0), (0, 0), (0, 2), (0, 2)), mode="reflect")
    # im2col for conv1: 2x2 kernel, dilation 2 -> taps at offsets {0,2}x{0,2}
    taps = jnp.stack([xpad[:, :, 0:H, 0:W], xpad[:, :, 0:H, 2:2 + W],
                      xpad[:, :, 2:2 + H, 0:W], xpad[:, :, 2:2 + H, 2:2 + W]],
                     axis=0)                                # (4 taps, 4 rot, B, H, W)
    return taps, xpad


def ppo_forward(x, kparams, action_n, use_pallas=True):
    B, C, H, W = x.shape
    assert C == 1 and H == W, "module semantics require single-channel square input"
    A = action_n
    M = 4 * B * H * W

    taps, _ = _im2col_taps(x[:, 0], H, W)
    # Channel-major, bf16 input: lane-dense (4, M) DMA, halved padded buffers.
    xcolT = taps.reshape(4, M).astype(jnp.bfloat16)

    if use_pallas:
        out = run_net(xcolT, kparams, action_n)            # (OUT_ROWS, M) f32
    else:
        out = _net_ref(xcolT, kparams)

    # Lane-dense kernel output -> (A+1, rot, B, H, W); transpose folded here.
    out = out[:A + 1].reshape(A + 1, 4, B, H, W)
    inv_k = (3, 2, 1, 0)                                   # inverse rotations
    out = jnp.stack([jnp.rot90(out[:, r], inv_k[r], axes=(2, 3)) for r in range(4)],
                    axis=0)                                # (4, A+1, B, H, W)

    # Combine stage (mean over 4 symmetry branches, THEN softmax over actions,
    # exactly as the PyTorch forward) left to XLA: tiny, mem-bound, fuses with
    # the surrounding rot90/reshape.
    avg = jnp.mean(out, axis=0)                            # (A+1, B, H, W)
    policy = jax.nn.softmax(avg[:A], axis=0).transpose(1, 0, 2, 3)   # (B, A, H, W)
    value = avg[A:A + 1].transpose(1, 0, 2, 3)                        # (B, 1, H, W)
    return policy, value


# --------------------------------------------------------------------------
# One-off f32 cross-check: im2col tap order / reflect-pad mapping vs a real
# dilated conv (lax.conv_general_dilated), per the correctness review.
# --------------------------------------------------------------------------
def _conv1_crosscheck(x, params, atol=1e-4):
    (w1, _b1) = params[0]
    B, C, H, W = x.shape
    taps, xpad = _im2col_taps(x[:, 0], H, W)
    M = 4 * B * H * W
    x1_im2col = jnp.einsum('tc,tm->cm', w1, taps.reshape(4, M),
                           precision='highest')
    x1_im2col = x1_im2col.reshape(64, 4 * B, H, W).transpose(1, 0, 2, 3)
    w_oihw = w1.reshape(2, 2, 64).transpose(2, 0, 1)[:, None]         # (64,1,2,2)
    x1_conv = lax.conv_general_dilated(
        xpad.reshape(4 * B, 1, H + 2, W + 2), w_oihw,
        window_strides=(1, 1), padding='VALID', rhs_dilation=(2, 2),
        dimension_numbers=('NCHW', 'OIHW', 'NCHW'), precision='highest')
    return jnp.max(jnp.abs(x1_im2col - x1_conv)) < atol


# --------------------------------------------------------------------------
if __name__ == "__main__":
    ACTION_N = 4
    B, C, H, W = 2, 1, 8, 8

    x = jax.random.normal(jax.random.PRNGKey(0), (B, C, H, W), dtype=jnp.float32)
    params = init_params(jax.random.PRNGKey(42), ACTION_N)
    kparams = pack_params(params, ACTION_N)

    # f32 cross-check of the conv1 im2col / reflect-pad mapping
    assert bool(_conv1_crosscheck(x, params)), "conv1 im2col mapping mismatch"

    policy, value = ppo_forward(x, kparams, ACTION_N, use_pallas=True)
    jax.block_until_ready((policy, value))

    policy_ref, value_ref = ppo_forward(x, kparams, ACTION_N, use_pallas=False)

    assert policy.shape == (B, ACTION_N, H, W), policy.shape
    assert value.shape == (B, 1, H, W), value.shape
    assert jnp.allclose(policy, policy_ref, rtol=2e-2, atol=2e-2)
    assert jnp.allclose(value, value_ref, rtol=2e-2, atol=2e-2)
    assert jnp.allclose(jnp.sum(policy, axis=1), 1.0, atol=1e-3)

    print("KERNEL_OK")
</pallas_src>

<mosaic_0001>
module attributes {stable_mosaic.version = 11 : i64} {
  func.func @_net_kernel(%arg0: i32, %arg1: memref<4x256xbf16, #tpu.memory_space<vmem>>, %arg2: memref<64x4xf32, #tpu.memory_space<vmem>>, %arg3: memref<4x64x1xf32, #tpu.memory_space<vmem>>, %arg4: memref<3x64x64xbf16, #tpu.memory_space<vmem>>, %arg5: memref<128x64xbf16, #tpu.memory_space<vmem>>, %arg6: memref<128x128xbf16, #tpu.memory_space<vmem>>, %arg7: memref<8x128xbf16, #tpu.memory_space<vmem>>, %arg8: memref<2x128x1xf32, #tpu.memory_space<vmem>>, %arg9: memref<8x1xf32, #tpu.memory_space<vmem>>, %arg10: memref<8x256xf32, #tpu.memory_space<vmem>>) attributes {dimension_semantics = [#tpu.dimension_semantics<parallel>], iteration_bounds = array<i64: 2>, scalar_prefetch = 0 : i64, scratch_operands = 0 : i64, tpu.core_type = #tpu.core_type<tc>, window_params = [{transform_indices = @transform_0, window_bounds = array<i64: 4, 256>}, {pipeline_mode = #tpu.pipeline_mode<synchronous>, transform_indices = @transform_1, window_bounds = array<i64: 64, 4>}, {pipeline_mode = #tpu.pipeline_mode<synchronous>, transform_indices = @transform_2, window_bounds = array<i64: 4, 64, 1>}, {pipeline_mode = #tpu.pipeline_mode<synchronous>, transform_indices = @transform_3, window_bounds = array<i64: 3, 64, 64>}, {pipeline_mode = #tpu.pipeline_mode<synchronous>, transform_indices = @transform_4, window_bounds = array<i64: 128, 64>}, {pipeline_mode = #tpu.pipeline_mode<synchronous>, transform_indices = @transform_5, window_bounds = array<i64: 128, 128>}, {pipeline_mode = #tpu.pipeline_mode<synchronous>, transform_indices = @transform_6, window_bounds = array<i64: 8, 128>}, {pipeline_mode = #tpu.pipeline_mode<synchronous>, transform_indices = @transform_7, window_bounds = array<i64: 2, 128, 1>}, {pipeline_mode = #tpu.pipeline_mode<synchronous>, transform_indices = @transform_8, window_bounds = array<i64: 8, 1>}, {transform_indices = @transform_9, window_bounds = array<i64: 8, 256>}]} {
    %c0 = arith.constant 0 : index
    %c0_0 = arith.constant 0 : index
    %0 = vector.load %arg1[%c0, %c0_0] : memref<4x256xbf16, #tpu.memory_space<vmem>>, vector<4x256xbf16>
    %1 = arith.extf %0 : vector<4x256xbf16> to vector<4x256xf32>
    %c0_1 = arith.constant 0 : index
    %c0_2 = arith.constant 0 : index
    %2 = vector.load %arg2[%c0_1, %c0_2] : memref<64x4xf32, #tpu.memory_space<vmem>>, vector<64x4xf32>
    %3 = vector.extract_strided_slice %2 {offsets = [0, 0], sizes = [64, 1], strides = [1, 1]} : vector<64x4xf32> to vector<64x1xf32>
    %4 = vector.extract_strided_slice %1 {offsets = [0, 0], sizes = [1, 256], strides = [1, 1]} : vector<4x256xf32> to vector<1x256xf32>
    %5 = vector.broadcast %3 : vector<64x1xf32> to vector<64x256xf32>
    %6 = vector.broadcast %4 : vector<1x256xf32> to vector<64x256xf32>
    %7 = arith.mulf %5, %6 : vector<64x256xf32>
    %8 = vector.extract_strided_slice %2 {offsets = [0, 1], sizes = [64, 1], strides = [1, 1]} : vector<64x4xf32> to vector<64x1xf32>
    %9 = vector.extract_strided_slice %1 {offsets = [1, 0], sizes = [1, 256], strides = [1, 1]} : vector<4x256xf32> to vector<1x256xf32>
    %10 = vector.broadcast %8 : vector<64x1xf32> to vector<64x256xf32>
    %11 = vector.broadcast %9 : vector<1x256xf32> to vector<64x256xf32>
    %12 = arith.mulf %10, %11 : vector<64x256xf32>
    %13 = arith.addf %7, %12 : vector<64x256xf32>
    %14 = vector.extract_strided_slice %2 {offsets = [0, 2], sizes = [64, 1], strides = [1, 1]} : vector<64x4xf32> to vector<64x1xf32>
    %15 = vector.extract_strided_slice %1 {offsets = [2, 0], sizes = [1, 256], strides = [1, 1]} : vector<4x256xf32> to vector<1x256xf32>
    %16 = vector.broadcast %14 : vector<64x1xf32> to vector<64x256xf32>
    %17 = vector.broadcast %15 : vector<1x256xf32> to vector<64x256xf32>
    %18 = arith.mulf %16, %17 : vector<64x256xf32>
    %19 = arith.addf %13, %18 : vector<64x256xf32>
    %20 = vector.extract_strided_slice %2 {offsets = [0, 3], sizes = [64, 1], strides = [1, 1]} : vector<64x4xf32> to vector<64x1xf32>
    %21 = vector.extract_strided_slice %1 {offsets = [3, 0], sizes = [1, 256], strides = [1, 1]} : vector<4x256xf32> to vector<1x256xf32>
    %22 = vector.broadcast %20 : vector<64x1xf32> to vector<64x256xf32>
    %23 = vector.broadcast %21 : vector<1x256xf32> to vector<64x256xf32>
    %24 = arith.mulf %22, %23 : vector<64x256xf32>
    %25 = arith.addf %19, %24 : vector<64x256xf32>
    %c0_3 = arith.constant 0 : index
    %c0_4 = arith.constant 0 : index
    %c0_5 = arith.constant 0 : index
    %26 = vector.load %arg3[%c0_3, %c0_4, %c0_5] : memref<4x64x1xf32, #tpu.memory_space<vmem>>, vector<1x64x1xf32>
    %27 = vector.shape_cast %26 : vector<1x64x1xf32> to vector<64x1xf32>
    %28 = vector.broadcast %27 : vector<64x1xf32> to vector<64x256xf32>
    %29 = arith.addf %25, %28 : vector<64x256xf32>
    %cst = arith.constant 0.000000e+00 : f32
    %30 = vector.broadcast %cst : f32 to vector<64x256xf32>
    %31 = arith.maximumf %29, %30 : vector<64x256xf32>
    %32 = arith.truncf %31 : vector<64x256xf32> to vector<64x256xbf16>
    %c0_6 = arith.constant 0 : index
    %c0_7 = arith.constant 0 : index
    %c0_8 = arith.constant 0 : index
    %33 = vector.load %arg4[%c0_6, %c0_7, %c0_8] : memref<3x64x64xbf16, #tpu.memory_space<vmem>>, vector<1x64x64xbf16>
    %34 = vector.shape_cast %33 : vector<1x64x64xbf16> to vector<64x64xbf16>
    %cst_9 = arith.constant dense<0.000000e+00> : vector<64x256xf32>
    %35 = tpu.matmul %34, %32, %cst_9 {dimension_numbers = #tpu.dot_dimension_numbers<[1], [0], [0], [1], [0, 0, 1, 1], [], []>} : vector<64x64xbf16>, vector<64x256xbf16>, vector<64x256xf32> -> vector<64x256xf32>
    %c1 = arith.constant 1 : index
    %c0_10 = arith.constant 0 : index
    %c0_11 = arith.constant 0 : index
    %36 = vector.load %arg3[%c1, %c0_10, %c0_11] : memref<4x64x1xf32, #tpu.memory_space<vmem>>, vector<1x64x1xf32>
    %37 = vector.shape_cast %36 : vector<1x64x1xf32> to vector<64x1xf32>
    %38 = vector.broadcast %37 : vector<64x1xf32> to vector<64x256xf32>
    %39 = arith.addf %35, %38 : vector<64x256xf32>
    %cst_12 = arith.constant 0.000000e+00 : f32
    %40 = vector.broadcast %cst_12 : f32 to vector<64x256xf32>
    %41 = arith.maximumf %39, %40 : vector<64x256xf32>
    %42 = arith.truncf %41 : vector<64x256xf32> to vector<64x256xbf16>
    %c1_13 = arith.constant 1 : index
    %c0_14 = arith.constant 0 : index
    %c0_15 = arith.constant 0 : index
    %43 = vector.load %arg4[%c1_13, %c0_14, %c0_15] : memref<3x64x64xbf16, #tpu.memory_space<vmem>>, vector<1x64x64xbf16>
    %44 = vector.shape_cast %43 : vector<1x64x64xbf16> to vector<64x64xbf16>
    %cst_16 = arith.constant dense<0.000000e+00> : vector<64x256xf32>
    %45 = tpu.matmul %44, %42, %cst_16 {dimension_numbers = #tpu.dot_dimension_numbers<[1], [0], [0], [1], [0, 0, 1, 1], [], []>} : vector<64x64xbf16>, vector<64x256xbf16>, vector<64x256xf32> -> vector<64x256xf32>
    %c2 = arith.constant 2 : index
    %c0_17 = arith.constant 0 : index
    %c0_18 = arith.constant 0 : index
    %46 = vector.load %arg3[%c2, %c0_17, %c0_18] : memref<4x64x1xf32, #tpu.memory_space<vmem>>, vector<1x64x1xf32>
    %47 = vector.shape_cast %46 : vector<1x64x1xf32> to vector<64x1xf32>
    %48 = vector.broadcast %47 : vector<64x1xf32> to vector<64x256xf32>
    %49 = arith.addf %45, %48 : vector<64x256xf32>
    %cst_19 = arith.constant 0.000000e+00 : f32
    %50 = vector.broadcast %cst_19 : f32 to vector<64x256xf32>
    %51 = arith.maximumf %49, %50 : vector<64x256xf32>
    %52 = arith.truncf %51 : vector<64x256xf32> to vector<64x256xbf16>
    %c2_20 = arith.constant 2 : index
    %c0_21 = arith.constant 0 : index
    %c0_22 = arith.constant 0 : index
    %53 = vector.load %arg4[%c2_20, %c0_21, %c0_22] : memref<3x64x64xbf16, #tpu.memory_space<vmem>>, vector<1x64x64xbf16>
    %54 = vector.shape_cast %53 : vector<1x64x64xbf16> to vector<64x64xbf16>
    %55 = arith.addf %52, %32 : vector<64x256xbf16>
    %cst_23 = arith.constant dense<0.000000e+00> : vector<64x256xf32>
    %56 = tpu.matmul %54, %55, %cst_23 {dimension_numbers = #tpu.dot_dimension_numbers<[1], [0], [0], [1], [0, 0, 1, 1], [], []>} : vector<64x64xbf16>, vector<64x256xbf16>, vector<64x256xf32> -> vector<64x256xf32>
    %c3 = arith.constant 3 : index
    %c0_24 = arith.constant 0 : index
    %c0_25 = arith.constant 0 : index
    %57 = vector.load %arg3[%c3, %c0_24, %c0_25] : memref<4x64x1xf32, #tpu.memory_space<vmem>>, vector<1x64x1xf32>
    %58 = vector.shape_cast %57 : vector<1x64x1xf32> to vector<64x1xf32>
    %59 = vector.broadcast %58 : vector<64x1xf32> to vector<64x256xf32>
    %60 = arith.addf %56, %59 : vector<64x256xf32>
    %cst_26 = arith.constant 0.000000e+00 : f32
    %61 = vector.broadcast %cst_26 : f32 to vector<64x256xf32>
    %62 = arith.maximumf %60, %61 : vector<64x256xf32>
    %63 = arith.truncf %62 : vector<64x256xf32> to vector<64x256xbf16>
    %c0_27 = arith.constant 0 : index
    %c0_28 = arith.constant 0 : index
    %64 = vector.load %arg5[%c0_27, %c0_28] : memref<128x64xbf16, #tpu.memory_space<vmem>>, vector<128x64xbf16>
    %cst_29 = arith.constant dense<0.000000e+00> : vector<128x256xf32>
    %65 = tpu.matmul %64, %63, %cst_29 {dimension_numbers = #tpu.dot_dimension_numbers<[1], [0], [0], [1], [0, 0, 1, 1], [], []>} : vector<128x64xbf16>, vector<64x256xbf16>, vector<128x256xf32> -> vector<128x256xf32>
    %c0_30 = arith.constant 0 : index
    %c0_31 = arith.constant 0 : index
    %c0_32 = arith.constant 0 : index
    %66 = vector.load %arg8[%c0_30, %c0_31, %c0_32] : memref<2x128x1xf32, #tpu.memory_space<vmem>>, vector<1x128x1xf32>
    %67 = vector.shape_cast %66 : vector<1x128x1xf32> to vector<128x1xf32>
    %68 = vector.broadcast %67 : vector<128x1xf32> to vector<128x256xf32>
    %69 = arith.addf %65, %68 : vector<128x256xf32>
    %cst_33 = arith.constant 0.000000e+00 : f32
    %70 = vector.broadcast %cst_33 : f32 to vector<128x256xf32>
    %71 = arith.maximumf %69, %70 : vector<128x256xf32>
    %72 = arith.truncf %71 : vector<128x256xf32> to vector<128x256xbf16>
    %c0_34 = arith.constant 0 : index
    %c0_35 = arith.constant 0 : index
    %73 = vector.load %arg6[%c0_34, %c0_35] : memref<128x128xbf16, #tpu.memory_space<vmem>>, vector<128x128xbf16>
    %cst_36 = arith.constant dense<0.000000e+00> : vector<128x256xf32>
    %74 = tpu.matmul %73, %72, %cst_36 {dimension_numbers = #tpu.dot_dimension_numbers<[1], [0], [0], [1], [0, 0, 1, 1], [], []>} : vector<128x128xbf16>, vector<128x256xbf16>, vector<128x256xf32> -> vector<128x256xf32>
    %c1_37 = arith.constant 1 : index
    %c0_38 = arith.constant 0 : index
    %c0_39 = arith.constant 0 : index
    %75 = vector.load %arg8[%c1_37, %c0_38, %c0_39] : memref<2x128x1xf32, #tpu.memory_space<vmem>>, vector<1x128x1xf32>
    %76 = vector.shape_cast %75 : vector<1x128x1xf32> to vector<128x1xf32>
    %77 = vector.broadcast %76 : vector<128x1xf32> to vector<128x256xf32>
    %78 = arith.addf %74, %77 : vector<128x256xf32>
    %cst_40 = arith.constant 0.000000e+00 : f32
    %79 = vector.broadcast %cst_40 : f32 to vector<128x256xf32>
    %80 = arith.maximumf %78, %79 : vector<128x256xf32>
    %81 = arith.truncf %80 : vector<128x256xf32> to vector<128x256xbf16>
    %c0_41 = arith.constant 0 : index
    %c0_42 = arith.constant 0 : index
    %82 = vector.load %arg7[%c0_41, %c0_42] : memref<8x128xbf16, #tpu.memory_space<vmem>>, vector<8x128xbf16>
    %cst_43 = arith.constant dense<0.000000e+00> : vector<8x256xf32>
    %83 = tpu.matmul %82, %81, %cst_43 {dimension_numbers = #tpu.dot_dimension_numbers<[1], [0], [0], [1], [0, 0, 1, 1], [], []>} : vector<8x128xbf16>, vector<128x256xbf16>, vector<8x256xf32> -> vector<8x256xf32>
    %c0_44 = arith.constant 0 : index
    %c0_45 = arith.constant 0 : index
    %84 = vector.load %arg9[%c0_44, %c0_45] : memref<8x1xf32, #tpu.memory_space<vmem>>, vector<8x1xf32>
    %85 = vector.broadcast %84 : vector<8x1xf32> to vector<8x256xf32>
    %86 = arith.addf %83, %85 : vector<8x256xf32>
    %c0_46 = arith.constant 0 : index
    %c0_47 = arith.constant 0 : index
    %87 = vector.load %arg10[%c0_46, %c0_47] : memref<8x256xf32, #tpu.memory_space<vmem>>, vector<8x256xf32>
    tpu.vector_store %arg10[%c0_46, %c0_47], %86 {strides = array<i32>} : memref<8x256xf32, #tpu.memory_space<vmem>>, vector<8x256xf32>,
    return
  }
  func.func @transform_0(%arg0: i32) -> (i32, i32) {
    %c0_i32 = arith.constant 0 : i32
    %c0_i32_0 = arith.constant 0 : i32
    return %c0_i32, %arg0 : i32, i32
  }
  func.func @transform_1(%arg0: i32) -> (i32, i32) {
    %c0_i32 = arith.constant 0 : i32
    %c0_i32_0 = arith.constant 0 : i32
    %c0_i32_1 = arith.constant 0 : i32
    return %c0_i32, %c0_i32_0 : i32, i32
  }
  func.func @transform_2(%arg0: i32) -> (i32, i32, i32) {
    %c0_i32 = arith.constant 0 : i32
    %c0_i32_0 = arith.constant 0 : i32
    %c0_i32_1 = arith.constant 0 : i32
    %c0_i32_2 = arith.constant 0 : i32
    return %c0_i32, %c0_i32_0, %c0_i32_1 : i32, i32, i32
  }
  func.func @transform_3(%arg0: i32) -> (i32, i32, i32) {
    %c0_i32 = arith.constant 0 : i32
    %c0_i32_0 = arith.constant 0 : i32
    %c0_i32_1 = arith.constant 0 : i32
    %c0_i32_2 = arith.constant 0 : i32
    return %c0_i32, %c0_i32_0, %c0_i32_1 : i32, i32, i32
  }
  func.func @transform_4(%arg0: i32) -> (i32, i32) {
    %c0_i32 = arith.constant 0 : i32
    %c0_i32_0 = arith.constant 0 : i32
    %c0_i32_1 = arith.constant 0 : i32
    return %c0_i32, %c0_i32_0 : i32, i32
  }
  func.func @transform_5(%arg0: i32) -> (i32, i32) {
    %c0_i32 = arith.constant 0 : i32
    %c0_i32_0 = arith.constant 0 : i32
    %c0_i32_1 = arith.constant 0 : i32
    return %c0_i32, %c0_i32_0 : i32, i32
  }
  func.func @transform_6(%arg0: i32) -> (i32, i32) {
    %c0_i32 = arith.constant 0 : i32
    %c0_i32_0 = arith.constant 0 : i32
    %c0_i32_1 = arith.constant 0 : i32
    return %c0_i32, %c0_i32_0 : i32, i32
  }
  func.func @transform_7(%arg0: i32) -> (i32, i32, i32) {
    %c0_i32 = arith.constant 0 : i32
    %c0_i32_0 = arith.constant 0 : i32
    %c0_i32_1 = arith.constant 0 : i32
    %c0_i32_2 = arith.constant 0 : i32
    return %c0_i32, %c0_i32_0, %c0_i32_1 : i32, i32, i32
  }
  func.func @transform_8(%arg0: i32) -> (i32, i32) {
    %c0_i32 = arith.constant 0 : i32
    %c0_i32_0 = arith.constant 0 : i32
    %c0_i32_1 = arith.constant 0 : i32
    return %c0_i32, %c0_i32_0 : i32, i32
  }
  func.func @transform_9(%arg0: i32) -> (i32, i32) {
    %c0_i32 = arith.constant 0 : i32
    %c0_i32_0 = arith.constant 0 : i32
    return %c0_i32, %arg0 : i32, i32
  }
}

</mosaic_0001>

<llo_original>
// kernel: tpu_custom_call.1
$region0: #{tpu_custom_call.1}
  #allocation0 [shape = 'u32[]', space=smem, size = 0x4, offset = 0x4, fixed_abs, tag = 'smem constant byte address 0x4 - core index']
  #allocation1 [shape = 'u32[144,128]{1,0:T(1,128)}', space=vmem, size = 0x12000, scoped, tag = 'internal scratch']
  %s0 = inlined_call_operand.vmem [shape: bf16[4,512], index: 0, kind: input, shape index: {}]
  %s1 = inlined_call_operand.vmem [shape: f32[64,4], index: 1, kind: input, shape index: {}]
  %s2 = inlined_call_operand.vmem [shape: f32[4,64,1], index: 2, kind: input, shape index: {}]
  %s3 = inlined_call_operand.vmem [shape: bf16[3,64,64], index: 3, kind: input, shape index: {}]
  %s4 = inlined_call_operand.vmem [shape: bf16[128,64], index: 4, kind: input, shape index: {}]
  %s5 = inlined_call_operand.vmem [shape: bf16[128,128], index: 5, kind: input, shape index: {}]
  %s6 = inlined_call_operand.vmem [shape: bf16[8,128], index: 6, kind: input, shape index: {}]
  %s7 = inlined_call_operand.vmem [shape: f32[2,128,1], index: 7, kind: input, shape index: {}]
  %s8 = inlined_call_operand.vmem [shape: f32[8,1], index: 8, kind: input, shape index: {}]
  %s9 = inlined_call_operand.hbm [shape: f32[8,512], index: 9, kind: output, shape index: {}]
  %s10 = sld [smem:[#allocation0]]
  $region69: #{tpu_custom_call.1} parent=0
    _
  %s12 = ssub.s32 1, %s10
  %s13 = scalar_select 0, %s12, %s10
  $region1: #{tpu_custom_call.1} parent=0
    #allocation2 [shape = 'u8[16384]{0}', space=vmem, size = 0x4000, scoped, tag = 'output window, operand 0']
    #allocation3 [shape = 's32[2]{0}', space=sflag, size = 0x8, scoped, tag = 'scoped memory for tpu_custom_call.1']
    %14 = vsyncpa [#allocation3], 0
    %s15 = scalar_lea.sflag [#allocation3], 1
    %16 = vsyncpa %s15, 0
    loop: start=0, step=1, limit=4
    $region2: #{tpu_custom_call.1} parent=1 // loop_pre_header
      _
    $region3: #{tpu_custom_call.1} parent=1 // loop_header
      %s18 = sphi 0, %s22
      %p19 = scmp.ge.s32.totalorder %s18, 4
      %s28 = sphi 0, %s30
      %s31 = sphi 0, %s28
      %s32 = sphi 0, %s31
      %s48 = sphi 0, %s32
      %s52 = sphi 0, %s52
      %s54 = sphi 0, %s52
      %s55 = sphi 0, %s54
      %s69 = sphi 0, %s55
      %s73 = sphi 0, %s73
      %s75 = sphi 0, %s73
      %s76 = sphi 0, %s75
      %s90 = sphi 0, %s76
      %s94 = sphi 0, %s94
      %s96 = sphi 0, %s94
      %s97 = sphi 0, %s96
      %s111 = sphi 0, %s97
      %s115 = sphi 0, %s115
      %s117 = sphi 0, %s115
      %s118 = sphi 0, %s117
      %s132 = sphi 0, %s118
      %s136 = sphi 0, %s136
      %s138 = sphi 0, %s136
      %s139 = sphi 0, %s138
      %s153 = sphi 0, %s139
      %s157 = sphi 0, %s157
      %s159 = sphi 0, %s157
      %s160 = sphi 0, %s159
      %s174 = sphi 0, %s160
      %s178 = sphi 0, %s178
      %s180 = sphi 0, %s178
      %s181 = sphi 0, %s180
      %s195 = sphi 0, %s181
      %s199 = sphi 0, %s199
      %s201 = sphi 0, %s199
      %s202 = sphi 0, %s201
      %s216 = sphi 0, %s202
      %s222 = sphi 0, %s224
      %s225 = sphi 0, %s222
      %s226 = sphi 0, %s225
      %s242 = sphi 0, %s226
    $region4: #{tpu_custom_call.1} parent=1 // loop_header_branch
      %21 = sbr.rel (%p19) target = $region8
    $region5: #{tpu_custom_call.1} parent=1 // loop_body
      %s23 = ssub.s32 %s18, 1
      %s24 = ssub.s32 %s18, 2
      %s25 = sadd.s32 %s18, 1
      %s26 = ssub.s32 %s18, %s25
      %p27 = scmp.eq.s32.totalorder %s26, 0
      %s29 = sadd.s32 %s28, 1
      %s30 = scalar_select %p27, %s28, %s29
      %p33 = pneg %p27
      %p34 = scmp.eq.s32.totalorder %s18, 1
      %p35 = por %p33, %p34
      %p36 = scmp.ne.s32.totalorder %s28, %s31
      %p37 = scmp.eq.s32.totalorder %s18, 0
      %p38 = por %p36, %p37
      %p39 = scmp.ne.s32.totalorder %s28, %s31
      %p40 = scmp.eq.s32.totalorder %s23, 1
      %p41 = por %p39, %p40
      %p42 = scmp.ne.s32.totalorder %s31, %s32
      %p43 = scmp.eq.s32.totalorder %s23, 0
      %p44 = por %p42, %p43
      %p45 = scmp.ne.s32.totalorder %s31, %s32
      %p46 = scmp.eq.s32.totalorder %s24, 1
      %p47 = por %p45, %p46
      %p49 = scmp.ne.s32.totalorder %s32, %s48
      %p50 = scmp.eq.s32.totalorder %s24, 0
      %p51 = por %p49, %p50
      %s53 = sadd.s32 %s52, 1
      %p56 = scmp.eq.s32.totalorder %s18, 1
      %p57 = scmp.ne.s32.totalorder %s52, %s54
      %p58 = scmp.eq.s32.totalorder %s18, 0
      %p59 = por %p57, %p58
      %p60 = scmp.ne.s32.totalorder %s52, %s54
      %p61 = scmp.eq.s32.totalorder %s23, 1
      %p62 = por %p60, %p61
      %p63 = scmp.ne.s32.totalorder %s54, %s55
      %p64 = scmp.eq.s32.totalorder %s23, 0
      %p65 = por %p63, %p64
      %p66 = scmp.ne.s32.totalorder %s54, %s55
      %p67 = scmp.eq.s32.totalorder %s24, 1
      %p68 = por %p66, %p67
      %p70 = scmp.ne.s32.totalorder %s55, %s69
      %p71 = scmp.eq.s32.totalorder %s24, 0
      %p72 = por %p70, %p71
      %s74 = sadd.s32 %s73, 1
      %p77 = scmp.eq.s32.totalorder %s18, 1
      %p78 = scmp.ne.s32.totalorder %s73, %s75
      %p79 = scmp.eq.s32.totalorder %s18, 0
      %p80 = por %p78, %p79
      %p81 = scmp.ne.s32.totalorder %s73, %s75
      %p82 = scmp.eq.s32.totalorder %s23, 1
      %p83 = por %p81, %p82
      %p84 = scmp.ne.s32.totalorder %s75, %s76
      %p85 = scmp.eq.s32.totalorder %s23, 0
      %p86 = por %p84, %p85
      %p87 = scmp.ne.s32.totalorder %s75, %s76
      %p88 = scmp.eq.s32.totalorder %s24, 1
      %p89 = por %p87, %p88
      %p91 = scmp.ne.s32.totalorder %s76, %s90
      %p92 = scmp.eq.s32.totalorder %s24, 0
      %p93 = por %p91, %p92
      %s95 = sadd.s32 %s94, 1
      %p98 = scmp.eq.s32.totalorder %s18, 1
      %p99 = scmp.ne.s32.totalorder %s94, %s96
      %p100 = scmp.eq.s32.totalorder %s18, 0
      %p101 = por %p99, %p100
      %p102 = scmp.ne.s32.totalorder %s94, %s96
      %p103 = scmp.eq.s32.totalorder %s23, 1
      %p104 = por %p102, %p103
      %p105 = scmp.ne.s32.totalorder %s96, %s97
      %p106 = scmp.eq.s32.totalorder %s23, 0
      %p107 = por %p105, %p106
      %p108 = scmp.ne.s32.totalorder %s96, %s97
      %p109 = scmp.eq.s32.totalorder %s24, 1
      %p110 = por %p108, %p109
      %p112 = scmp.ne.s32.totalorder %s97, %s111
      %p113 = scmp.eq.s32.totalorder %s24, 0
      %p114 = por %p112, %p113
      %s116 = sadd.s32 %s115, 1
      %p119 = scmp.eq.s32.totalorder %s18, 1
      %p120 = scmp.ne.s32.totalorder %s115, %s117
      %p121 = scmp.eq.s32.totalorder %s18, 0
      %p122 = por %p120, %p121
      %p123 = scmp.ne.s32.totalorder %s115, %s117
      %p124 = scmp.eq.s32.totalorder %s23, 1
      %p125 = por %p123, %p124
      %p126 = scmp.ne.s32.totalorder %s117, %s118
      %p127 = scmp.eq.s32.totalorder %s23, 0
      %p128 = por %p126, %p127
      %p129 = scmp.ne.s32.totalorder %s117, %s118
      %p130 = scmp.eq.s32.totalorder %s24, 1
      %p131 = por %p129, %p130
      %p133 = scmp.ne.s32.totalorder %s118, %s132
      %p134 = scmp.eq.s32.totalorder %s24, 0
      %p135 = por %p133, %p134
      %s137 = sadd.s32 %s136, 1
      %p140 = scmp.eq.s32.totalorder %s18, 1
      %p141 = scmp.ne.s32.totalorder %s136, %s138
      %p142 = scmp.eq.s32.totalorder %s18, 0
      %p143 = por %p141, %p142
      %p144 = scmp.ne.s32.totalorder %s136, %s138
      %p145 = scmp.eq.s32.totalorder %s23, 1
      %p146 = por %p144, %p145
      %p147 = scmp.ne.s32.totalorder %s138, %s139
      %p148 = scmp.eq.s32.totalorder %s23, 0
      %p149 = por %p147, %p148
      %p150 = scmp.ne.s32.totalorder %s138, %s139
      %p151 = scmp.eq.s32.totalorder %s24, 1
      %p152 = por %p150, %p151
      %p154 = scmp.ne.s32.totalorder %s139, %s153
      %p155 = scmp.eq.s32.totalorder %s24, 0
      %p156 = por %p154, %p155
      %s158 = sadd.s32 %s157, 1
      %p161 = scmp.eq.s32.totalorder %s18, 1
      %p162 = scmp.ne.s32.totalorder %s157, %s159
      %p163 = scmp.eq.s32.totalorder %s18, 0
      %p164 = por %p162, %p163
      %p165 = scmp.ne.s32.totalorder %s157, %s159
      %p166 = scmp.eq.s32.totalorder %s23, 1
      %p167 = por %p165, %p166
      %p168 = scmp.ne.s32.totalorder %s159, %s160
      %p169 = scmp.eq.s32.totalorder %s23, 0
      %p170 = por %p168, %p169
      %p171 = scmp.ne.s32.totalorder %s159, %s160
      %p172 = scmp.eq.s32.totalorder %s24, 1
      %p173 = por %p171, %p172
      %p175 = scmp.ne.s32.totalorder %s160, %s174
      %p176 = scmp.eq.s32.totalorder %s24, 0
      %p177 = por %p175, %p176
      %s179 = sadd.s32 %s178, 1
      %p182 = scmp.eq.s32.totalorder %s18, 1
      %p183 = scmp.ne.s32.totalorder %s178, %s180
      %p184 = scmp.eq.s32.totalorder %s18, 0
      %p185 = por %p183, %p184
      %p186 = scmp.ne.s32.totalorder %s178, %s180
      %p187 = scmp.eq.s32.totalorder %s23, 1
      %p188 = por %p186, %p187
      %p189 = scmp.ne.s32.totalorder %s180, %s181
      %p190 = scmp.eq.s32.totalorder %s23, 0
      %p191 = por %p189, %p190
      %p192 = scmp.ne.s32.totalorder %s180, %s181
      %p193 = scmp.eq.s32.totalorder %s24, 1
      %p194 = por %p192, %p193
      %p196 = scmp.ne.s32.totalorder %s181, %s195
      %p197 = scmp.eq.s32.totalorder %s24, 0
      %p198 = por %p196, %p197
      %s200 = sadd.s32 %s199, 1
      %p203 = scmp.eq.s32.totalorder %s18, 1
      %p204 = scmp.ne.s32.totalorder %s199, %s201
      %p205 = scmp.eq.s32.totalorder %s18, 0
      %p206 = por %p204, %p205
      %p207 = scmp.ne.s32.totalorder %s199, %s201
      %p208 = scmp.eq.s32.totalorder %s23, 1
      %p209 = por %p207, %p208
      %p210 = scmp.ne.s32.totalorder %s201, %s202
      %p211 = scmp.eq.s32.totalorder %s23, 0
      %p212 = por %p210, %p211
      %p213 = scmp.ne.s32.totalorder %s201, %s202
      %p214 = scmp.eq.s32.totalorder %s24, 1
      %p215 = por %p213, %p214
      %p217 = scmp.ne.s32.totalorder %s202, %s216
      %p218 = scmp.eq.s32.totalorder %s24, 0
      %p219 = por %p217, %p218
      %s220 = ssub.s32 %s18, %s25
      %p221 = scmp.eq.s32.totalorder %s220, 0
      %s223 = sadd.s32 %s222, 1
      %s224 = scalar_select %p221, %s222, %s223
      %p227 = pneg %p221
      %p228 = scmp.eq.s32.totalorder %s18, 1
      %p229 = por %p227, %p228
      %p230 = scmp.ne.s32.totalorder %s222, %s225
      %p231 = scmp.eq.s32.totalorder %s18, 0
      %p232 = por %p230, %p231
      %p233 = scmp.ne.s32.totalorder %s222, %s225
      %p234 = scmp.eq.s32.totalorder %s23, 1
      %p235 = por %p233, %p234
      %p236 = scmp.ne.s32.totalorder %s225, %s226
      %p237 = scmp.eq.s32.totalorder %s23, 0
      %p238 = por %p236, %p237
      %p239 = scmp.ne.s32.totalorder %s225, %s226
      %p240 = scmp.eq.s32.totalorder %s24, 1
      %p241 = por %p239, %p240
      %p243 = scmp.ne.s32.totalorder %s226, %s242
      %p244 = scmp.eq.s32.totalorder %s24, 0
      %p245 = por %p243, %p244
      %p246 = scmp.le.s32.totalorder 1, %s18
      %p247 = scmp.lt.s32.totalorder %s18, 3
      %p248 = pnand %p246, %p247
      %p249 = pneg %p248
      // Predicated region
      $region9: #{tpu_custom_call.1} parent=5 // pred_check
        _
      $region10: #{tpu_custom_call.1} parent=5 // pred_check_branch
        %251 = sbr.rel (%p248) target = $region12
      $region11: #{tpu_custom_call.1} parent=5 // pred_region
        %s252 = ssub.s32 %s18, 1
        // Predicated region
        $region13: #{tpu_custom_call.1} parent=11 // pred_check
          %p253 = pneg %p65
        $region14: #{tpu_custom_call.1} parent=11 // pred_check_branch
          %255 = sbr.rel (%p253) target = $region16
        $region15: #{tpu_custom_call.1} parent=11 // pred_region
          _
        $region16: #{tpu_custom_call.1} parent=11 // pred_fallthru
          _
        // Predicated region
        $region17: #{tpu_custom_call.1} parent=11 // pred_check
          %p256 = pneg %p86
        $region18: #{tpu_custom_call.1} parent=11 // pred_check_branch
          %258 = sbr.rel (%p256) target = $region20
        $region19: #{tpu_custom_call.1} parent=11 // pred_region
          _
        $region20: #{tpu_custom_call.1} parent=11 // pred_fallthru
          _
        // Predicated region
        $region21: #{tpu_custom_call.1} parent=11 // pred_check
          %p259 = pneg %p107
        $region22: #{tpu_custom_call.1} parent=11 // pred_check_branch
          %261 = sbr.rel (%p259) target = $region24
        $region23: #{tpu_custom_call.1} parent=11 // pred_region
          _
        $region24: #{tpu_custom_call.1} parent=11 // pred_fallthru
          _
        // Predicated region
        $region25: #{tpu_custom_call.1} parent=11 // pred_check
          %p262 = pneg %p128
        $region26: #{tpu_custom_call.1} parent=11 // pred_check_branch
          %264 = sbr.rel (%p262) target = $region28
        $region27: #{tpu_custom_call.1} parent=11 // pred_region
          _
        $region28: #{tpu_custom_call.1} parent=11 // pred_fallthru
          _
        // Predicated region
        $region29: #{tpu_custom_call.1} parent=11 // pred_check
          %p265 = pneg %p149
        $region30: #{tpu_custom_call.1} parent=11 // pred_check_branch
          %267 = sbr.rel (%p265) target = $region32
        $region31: #{tpu_custom_call.1} parent=11 // pred_region
          _
        $region32: #{tpu_custom_call.1} parent=11 // pred_fallthru
          _
        // Predicated region
        $region33: #{tpu_custom_call.1} parent=11 // pred_check
          %p268 = pneg %p170
        $region34: #{tpu_custom_call.1} parent=11 // pred_check_branch
          %270 = sbr.rel (%p268) target = $region36
        $region35: #{tpu_custom_call.1} parent=11 // pred_region
          _
        $region36: #{tpu_custom_call.1} parent=11 // pred_fallthru
          _
        // Predicated region
        $region37: #{tpu_custom_call.1} parent=11 // pred_check
          %p271 = pneg %p191
        $region38: #{tpu_custom_call.1} parent=11 // pred_check_branch
          %273 = sbr.rel (%p271) target = $region40
        $region39: #{tpu_custom_call.1} parent=11 // pred_region
          _
        $region40: #{tpu_custom_call.1} parent=11 // pred_fallthru
          _
        // Predicated region
        $region41: #{tpu_custom_call.1} parent=11 // pred_check
          %p274 = pneg %p212
        $region42: #{tpu_custom_call.1} parent=11 // pred_check_branch
          %276 = sbr.rel (%p274) target = $region44
        $region43: #{tpu_custom_call.1} parent=11 // pred_region
          _
        $region44: #{tpu_custom_call.1} parent=11 // pred_fallthru
          _
      $region12: #{tpu_custom_call.1} parent=5 // pred_fallthru
        _
      %p277 = scmp.lt.s32.totalorder %s18, 2
      // Predicated region
      $region45: #{tpu_custom_call.1} parent=5 // pred_check
        %p278 = pneg %p277
      $region46: #{tpu_custom_call.1} parent=5 // pred_check_branch
        %280 = sbr.rel (%p278) target = $region48
      $region47: #{tpu_custom_call.1} parent=5 // pred_region
        // Predicated region
        $region49: #{tpu_custom_call.1} parent=47 // pred_check
          %p281 = pneg %p38
        $region50: #{tpu_custom_call.1} parent=47 // pred_check_branch
          %283 = sbr.rel (%p281) target = $region52
        $region51: #{tpu_custom_call.1} parent=47 // pred_region
          %s284 = smul.u32 2, %s18
          %p285 = scmp.lt.s32.totalorder %s284, 3
          %s286 = scalar_select %p285, %s284, 3
          %s287 = smul.addr %s286, 2
          %s288 = scalar_lea.vmem %s0, %s287
          %s289 = smul.u32 2, %s18
        $region52: #{tpu_custom_call.1} parent=47 // pred_fallthru
          _
      $region48: #{tpu_custom_call.1} parent=5 // pred_fallthru
        _
      %p290 = scmp.le.s32.totalorder 1, %s18
      %p291 = scmp.lt.s32.totalorder %s18, 3
      %p292 = pnand %p290, %p291
      %p293 = pneg %p292
      // Predicated region
      $region53: #{tpu_custom_call.1} parent=5 // pred_check
        _
      $region54: #{tpu_custom_call.1} parent=5 // pred_check_branch
        %295 = sbr.rel (%p292) target = $region56
      $region55: #{tpu_custom_call.1} parent=5 // pred_region
        %s296 = ssub.s32 %s18, 1
        %s297 = smul.u32 2, %s23
        %p298 = scmp.lt.s32.totalorder %s297, 3
        %s299 = scalar_select %p298, %s297, 3
        %s300 = smul.addr %s299, 2
        %s301 = scalar_lea.vmem %s0, %s300
        %p302 = pneg %p44
        %p303 = pneg %p41
        %p304 = pneg %p65
        %p305 = pneg %p62
        %p306 = pneg %p86
        %p307 = pneg %p83
        %p308 = pneg %p107
        %p309 = pneg %p104
        %p310 = pneg %p128
        %p311 = pneg %p125
        %p312 = pneg %p149
        %p313 = pneg %p146
        %p314 = pneg %p170
        %p315 = pneg %p167
        %p316 = pneg %p191
        %p317 = pneg %p188
        %p318 = pneg %p212
        %p319 = pneg %p209
        %p320 = pneg %p238
        %p321 = pneg %p235
        %s322 = sand.u32 %s225, 1
        %s323 = scalar_lea.sflag [#allocation3], %s322
        %s324 = sand.u32 %s225, 1
        %s325 = smul.addr %s324, 16
        %s326 = scalar_lea.vmem [#allocation2], %s325
        %s327 = smul.u32 2, %s23
        %p328 = scmp.lt.s32.totalorder %s327, 3
        %s329 = scalar_select %p328, %s327, 3
        %s330 = smul.addr %s329, 2
        %s331 = scalar_lea.vmem %s0, %s330
        %s332 = smul.u32 2, %s23
        %s333 = smul.u32 2, %s23
        %v335 = vld [vmem:[%s331] sm:$0xf]
        %v336 = vunpack.c.l.bf16 %v335
        %v337 = vld [vmem:[%s1] sm:$0xff]
        %v338 = vld [vmem:[%s1 + $0x8] sm:$0xff]
        %v339 = vld [vmem:[%s1 + $0x10] sm:$0xff]
        %v340 = vld [vmem:[%s1 + $0x18] sm:$0xff]
        %v341 = vld [vmem:[%s1 + $0x20] sm:$0xff]
        %v342 = vld [vmem:[%s1 + $0x28] sm:$0xff]
        %v343 = vld [vmem:[%s1 + $0x30] sm:$0xff]
        %v344 = vld [vmem:[%s1 + $0x38] sm:$0xff]
        %346 = vset.pattern.permute.xlu0 0
        %347 = vperm.xlu0 %346, %v337
        %v348 = vpop.permute.xlu0 %347
        %351 = vset.pattern.permute.xlu0 0
        %352 = vperm.xlu0 %351, %v338
        %v353 = vpop.permute.xlu0 %352
        %356 = vset.pattern.permute.xlu0 0
        %357 = vperm.xlu0 %356, %v339
        %v358 = vpop.permute.xlu0 %357
        %361 = vset.pattern.permute.xlu0 0
        %362 = vperm.xlu0 %361, %v340
        %v363 = vpop.permute.xlu0 %362
        %366 = vset.pattern.permute.xlu0 0
        %367 = vperm.xlu0 %366, %v341
        %v368 = vpop.permute.xlu0 %367
        %371 = vset.pattern.permute.xlu0 0
        %372 = vperm.xlu0 %371, %v342
        %v373 = vpop.permute.xlu0 %372
        %376 = vset.pattern.permute.xlu0 0
        %377 = vperm.xlu0 %376, %v343
        %v378 = vpop.permute.xlu0 %377
        %381 = vset.pattern.permute.xlu0 0
        %382 = vperm.xlu0 %381, %v344
        %v383 = vpop.permute.xlu0 %382
        %v386 = vlaneseq
        %v387 = vshrl.u32 %v386, 7
        %v388 = vsub.s32 0, %v387
        %v389 = vrot.slane %v336, %v388
        %v390 = vlaneseq
        %v391 = vshrl.u32 %v390, 7
        %v392 = vsub.s32 4, %v391
        %v393 = vrot.slane %v336, %v392
        %v396 = vlaneseq
        %v397 = vshrl.u32 %v396, 7
        %v398 = vsub.s32 0, %v397
        %v399 = vrot.slane %v389, %v398
        %v400 = vlaneseq
        %v401 = vshrl.u32 %v400, 7
        %v402 = vsub.s32 0, %v401
        %v403 = vrot.slane %v393, %v402
        %v404 = vmul.f32 %v348, %v399
        %v405 = vmul.f32 %v348, %v403
        %v406 = vmul.f32 %v353, %v399
        %v407 = vmul.f32 %v353, %v403
        %v408 = vmul.f32 %v358, %v399
        %v409 = vmul.f32 %v358, %v403
        %v410 = vmul.f32 %v363, %v399
        %v411 = vmul.f32 %v363, %v403
        %v412 = vmul.f32 %v368, %v399
        %v413 = vmul.f32 %v368, %v403
        %v414 = vmul.f32 %v373, %v399
        %v415 = vmul.f32 %v373, %v403
        %v416 = vmul.f32 %v378, %v399
        %v417 = vmul.f32 %v378, %v403
        %v418 = vmul.f32 %v383, %v399
        %v419 = vmul.f32 %v383, %v403
        %420 = vset.pattern.permute.xlu0 1
        %421 = vperm.xlu0 %420, %v337
        %v422 = vpop.permute.xlu0 %421
        %424 = vset.pattern.permute.xlu0 1
        %425 = vperm.xlu0 %424, %v338
        %v426 = vpop.permute.xlu0 %425
        %428 = vset.pattern.permute.xlu0 1
        %429 = vperm.xlu0 %428, %v339
        %v430 = vpop.permute.xlu0 %429
        %432 = vset.pattern.permute.xlu0 1
        %433 = vperm.xlu0 %432, %v340
        %v434 = vpop.permute.xlu0 %433
        %436 = vset.pattern.permute.xlu0 1
        %437 = vperm.xlu0 %436, %v341
        %v438 = vpop.permute.xlu0 %437
        %440 = vset.pattern.permute.xlu0 1
        %441 = vperm.xlu0 %440, %v342
        %v442 = vpop.permute.xlu0 %441
        %444 = vset.pattern.permute.xlu0 1
        %445 = vperm.xlu0 %444, %v343
        %v446 = vpop.permute.xlu0 %445
        %448 = vset.pattern.permute.xlu0 1
        %449 = vperm.xlu0 %448, %v344
        %v450 = vpop.permute.xlu0 %449
        %v452 = vlaneseq
        %v453 = vshrl.u32 %v452, 7
        %v454 = vsub.s32 1, %v453
        %v455 = vrot.slane %v336, %v454
        %v456 = vlaneseq
        %v457 = vshrl.u32 %v456, 7
        %v458 = vsub.s32 5, %v457
        %v459 = vrot.slane %v336, %v458
        %v462 = vlaneseq
        %v463 = vshrl.u32 %v462, 7
        %v464 = vsub.s32 1, %v463
        %v465 = vrot.slane %v455, %v464
        %v466 = vlaneseq
        %v467 = vshrl.u32 %v466, 7
        %v468 = vsub.s32 1, %v467
        %v469 = vrot.slane %v459, %v468
        %v470 = vmul.f32 %v422, %v465
        %v471 = vmul.f32 %v422, %v469
        %v472 = vmul.f32 %v426, %v465
        %v473 = vmul.f32 %v426, %v469
        %v474 = vmul.f32 %v430, %v465
        %v475 = vmul.f32 %v430, %v469
        %v476 = vmul.f32 %v434, %v465
        %v477 = vmul.f32 %v434, %v469
        %v478 = vmul.f32 %v438, %v465
        %v479 = vmul.f32 %v438, %v469
        %v480 = vmul.f32 %v442, %v465
        %v481 = vmul.f32 %v442, %v469
        %v482 = vmul.f32 %v446, %v465
        %v483 = vmul.f32 %v446, %v469
        %v484 = vmul.f32 %v450, %v465
        %v485 = vmul.f32 %v450, %v469
        %v486 = vadd.f32 %v404, %v470
        %v487 = vadd.f32 %v405, %v471
        %v488 = vadd.f32 %v406, %v472
        %v489 = vadd.f32 %v407, %v473
        %v490 = vadd.f32 %v408, %v474
        %v491 = vadd.f32 %v409, %v475
        %v492 = vadd.f32 %v410, %v476
        %v493 = vadd.f32 %v411, %v477
        %v494 = vadd.f32 %v412, %v478
        %v495 = vadd.f32 %v413, %v479
        %v496 = vadd.f32 %v414, %v480
        %v497 = vadd.f32 %v415, %v481
        %v498 = vadd.f32 %v416, %v482
        %v499 = vadd.f32 %v417, %v483
        %v500 = vadd.f32 %v418, %v484
        %v501 = vadd.f32 %v419, %v485
        %502 = vset.pattern.permute.xlu0 2
        %503 = vperm.xlu0 %502, %v337
        %v504 = vpop.permute.xlu0 %503
        %506 = vset.pattern.permute.xlu0 2
        %507 = vperm.xlu0 %506, %v338
        %v508 = vpop.permute.xlu0 %507
        %510 = vset.pattern.permute.xlu0 2
        %511 = vperm.xlu0 %510, %v339
        %v512 = vpop.permute.xlu0 %511
        %514 = vset.pattern.permute.xlu0 2
        %515 = vperm.xlu0 %514, %v340
        %v516 = vpop.permute.xlu0 %515
        %518 = vset.pattern.permute.xlu0 2
        %519 = vperm.xlu0 %518, %v341
        %v520 = vpop.permute.xlu0 %519
        %522 = vset.pattern.permute.xlu0 2
        %523 = vperm.xlu0 %522, %v342
        %v524 = vpop.permute.xlu0 %523
        %526 = vset.pattern.permute.xlu0 2
        %527 = vperm.xlu0 %526, %v343
        %v528 = vpop.permute.xlu0 %527
        %530 = vset.pattern.permute.xlu0 2
        %531 = vperm.xlu0 %530, %v344
        %v532 = vpop.permute.xlu0 %531
        %v534 = vlaneseq
        %v535 = vshrl.u32 %v534, 7
        %v536 = vsub.s32 2, %v535
        %v537 = vrot.slane %v336, %v536
        %v538 = vlaneseq
        %v539 = vshrl.u32 %v538, 7
        %v540 = vsub.s32 6, %v539
        %v541 = vrot.slane %v336, %v540
        %v544 = vlaneseq
        %v545 = vshrl.u32 %v544, 7
        %v546 = vsub.s32 2, %v545
        %v547 = vrot.slane %v537, %v546
        %v548 = vlaneseq
        %v549 = vshrl.u32 %v548, 7
        %v550 = vsub.s32 2, %v549
        %v551 = vrot.slane %v541, %v550
        %v552 = vmul.f32 %v504, %v547
        %v553 = vmul.f32 %v504, %v551
        %v554 = vmul.f32 %v508, %v547
        %v555 = vmul.f32 %v508, %v551
        %v556 = vmul.f32 %v512, %v547
        %v557 = vmul.f32 %v512, %v551
        %v558 = vmul.f32 %v516, %v547
        %v559 = vmul.f32 %v516, %v551
        %v560 = vmul.f32 %v520, %v547
        %v561 = vmul.f32 %v520, %v551
        %v562 = vmul.f32 %v524, %v547
        %v563 = vmul.f32 %v524, %v551
        %v564 = vmul.f32 %v528, %v547
        %v565 = vmul.f32 %v528, %v551
        %v566 = vmul.f32 %v532, %v547
        %v567 = vmul.f32 %v532, %v551
        %v568 = vadd.f32 %v486, %v552
        %v569 = vadd.f32 %v487, %v553
        %v570 = vadd.f32 %v488, %v554
        %v571 = vadd.f32 %v489, %v555
        %v572 = vadd.f32 %v490, %v556
        %v573 = vadd.f32 %v491, %v557
        %v574 = vadd.f32 %v492, %v558
        %v575 = vadd.f32 %v493, %v559
        %v576 = vadd.f32 %v494, %v560
        %v577 = vadd.f32 %v495, %v561
        %v578 = vadd.f32 %v496, %v562
        %v579 = vadd.f32 %v497, %v563
        %v580 = vadd.f32 %v498, %v564
        %v581 = vadd.f32 %v499, %v565
        %v582 = vadd.f32 %v500, %v566
        %v583 = vadd.f32 %v501, %v567
        %584 = vset.pattern.permute.xlu0 3
        %585 = vperm.xlu0 %584, %v337
        %v586 = vpop.permute.xlu0 %585
        %588 = vset.pattern.permute.xlu0 3
        %589 = vperm.xlu0 %588, %v338
        %v590 = vpop.permute.xlu0 %589
        %592 = vset.pattern.permute.xlu0 3
        %593 = vperm.xlu0 %592, %v339
        %v594 = vpop.permute.xlu0 %593
        %596 = vset.pattern.permute.xlu0 3
        %597 = vperm.xlu0 %596, %v340
        %v598 = vpop.permute.xlu0 %597
        %600 = vset.pattern.permute.xlu0 3
        %601 = vperm.xlu0 %600, %v341
        %v602 = vpop.permute.xlu0 %601
        %604 = vset.pattern.permute.xlu0 3
        %605 = vperm.xlu0 %604, %v342
        %v606 = vpop.permute.xlu0 %605
        %608 = vset.pattern.permute.xlu0 3
        %609 = vperm.xlu0 %608, %v343
        %v610 = vpop.permute.xlu0 %609
        %612 = vset.pattern.permute.xlu0 3
        %613 = vperm.xlu0 %612, %v344
        %v614 = vpop.permute.xlu0 %613
        %v616 = vlaneseq
        %v617 = vshrl.u32 %v616, 7
        %v618 = vsub.s32 3, %v617
        %v619 = vrot.slane %v336, %v618
        %v620 = vlaneseq
        %v621 = vshrl.u32 %v620, 7
        %v622 = vsub.s32 7, %v621
        %v623 = vrot.slane %v336, %v622
        %v626 = vlaneseq
        %v627 = vshrl.u32 %v626, 7
        %v628 = vsub.s32 3, %v627
        %v629 = vrot.slane %v619, %v628
        %v630 = vlaneseq
        %v631 = vshrl.u32 %v630, 7
        %v632 = vsub.s32 3, %v631
        %v633 = vrot.slane %v623, %v632
        %v634 = vmul.f32 %v586, %v629
        %v635 = vmul.f32 %v586, %v633
        %v636 = vmul.f32 %v590, %v629
        %v637 = vmul.f32 %v590, %v633
        %v638 = vmul.f32 %v594, %v629
        %v639 = vmul.f32 %v594, %v633
        %v640 = vmul.f32 %v598, %v629
        %v641 = vmul.f32 %v598, %v633
        %v642 = vmul.f32 %v602, %v629
        %v643 = vmul.f32 %v602, %v633
        %v644 = vmul.f32 %v606, %v629
        %v645 = vmul.f32 %v606, %v633
        %v646 = vmul.f32 %v610, %v629
        %v647 = vmul.f32 %v610, %v633
        %v648 = vmul.f32 %v614, %v629
        %v649 = vmul.f32 %v614, %v633
        %v650 = vadd.f32 %v568, %v634
        %v651 = vadd.f32 %v569, %v635
        %v652 = vadd.f32 %v570, %v636
        %v653 = vadd.f32 %v571, %v637
        %v654 = vadd.f32 %v572, %v638
        %v655 = vadd.f32 %v573, %v639
        %v656 = vadd.f32 %v574, %v640
        %v657 = vadd.f32 %v575, %v641
        %v658 = vadd.f32 %v576, %v642
        %v659 = vadd.f32 %v577, %v643
        %v660 = vadd.f32 %v578, %v644
        %v661 = vadd.f32 %v579, %v645
        %v662 = vadd.f32 %v580, %v646
        %v663 = vadd.f32 %v581, %v647
        %v664 = vadd.f32 %v582, %v648
        %v665 = vadd.f32 %v583, %v649
        %v666 = vld [vmem:[%s2] sm:$0xff]
        %v667 = vld [vmem:[%s2 + $0x8] sm:$0xff]
        %v668 = vld [vmem:[%s2 + $0x10] sm:$0xff]
        %v669 = vld [vmem:[%s2 + $0x18] sm:$0xff]
        %v670 = vld [vmem:[%s2 + $0x20] sm:$0xff]
        %v671 = vld [vmem:[%s2 + $0x28] sm:$0xff]
        %v672 = vld [vmem:[%s2 + $0x30] sm:$0xff]
        %v673 = vld [vmem:[%s2 + $0x38] sm:$0xff]
        %675 = vset.pattern.permute.xlu0 0
        %676 = vperm.xlu0 %675, %v666
        %v677 = vpop.permute.xlu0 %676
        %680 = vset.pattern.permute.xlu0 0
        %681 = vperm.xlu0 %680, %v667
        %v682 = vpop.permute.xlu0 %681
        %685 = vset.pattern.permute.xlu0 0
        %686 = vperm.xlu0 %685, %v668
        %v687 = vpop.permute.xlu0 %686
        %690 = vset.pattern.permute.xlu0 0
        %691 = vperm.xlu0 %690, %v669
        %v692 = vpop.permute.xlu0 %691
        %695 = vset.pattern.permute.xlu0 0
        %696 = vperm.xlu0 %695, %v670
        %v697 = vpop.permute.xlu0 %696
        %700 = vset.pattern.permute.xlu0 0
        %701 = vperm.xlu0 %700, %v671
        %v702 = vpop.permute.xlu0 %701
        %705 = vset.pattern.permute.xlu0 0
        %706 = vperm.xlu0 %705, %v672
        %v707 = vpop.permute.xlu0 %706
        %710 = vset.pattern.permute.xlu0 0
        %711 = vperm.xlu0 %710, %v673
        %v712 = vpop.permute.xlu0 %711
        %v714 = vadd.f32 %v650, %v677
        %v715 = vadd.f32 %v651, %v677
        %v716 = vadd.f32 %v652, %v682
        %v717 = vadd.f32 %v653, %v682
        %v718 = vadd.f32 %v654, %v687
        %v719 = vadd.f32 %v655, %v687
        %v720 = vadd.f32 %v656, %v692
        %v721 = vadd.f32 %v657, %v692
        %v722 = vadd.f32 %v658, %v697
        %v723 = vadd.f32 %v659, %v697
        %v724 = vadd.f32 %v660, %v702
        %v725 = vadd.f32 %v661, %v702
        %v726 = vadd.f32 %v662, %v707
        %v727 = vadd.f32 %v663, %v707
        %v728 = vadd.f32 %v664, %v712
        %v729 = vadd.f32 %v665, %v712
        %v730 = vmax.f32 %v714, 0.0
        %v731 = vmax.f32 %v715, 0.0
        %v732 = vmax.f32 %v716, 0.0
        %v733 = vmax.f32 %v717, 0.0
        %v734 = vmax.f32 %v718, 0.0
        %v735 = vmax.f32 %v719, 0.0
        %v736 = vmax.f32 %v720, 0.0
        %v737 = vmax.f32 %v721, 0.0
        %v738 = vmax.f32 %v722, 0.0
        %v739 = vmax.f32 %v723, 0.0
        %v740 = vmax.f32 %v724, 0.0
        %v741 = vmax.f32 %v725, 0.0
        %v742 = vmax.f32 %v726, 0.0
        %v743 = vmax.f32 %v727, 0.0
        %v744 = vmax.f32 %v728, 0.0
        %v745 = vmax.f32 %v729, 0.0
        %v746 = vpack.c.bf16 %v732, %v730
        %v747 = vpack.c.bf16 %v733, %v731
        %v748 = vpack.c.bf16 %v736, %v734
        %v749 = vpack.c.bf16 %v737, %v735
        %v750 = vpack.c.bf16 %v740, %v738
        %v751 = vpack.c.bf16 %v741, %v739
        %v752 = vpack.c.bf16 %v744, %v742
        %v753 = vpack.c.bf16 %v745, %v743
        %v754 = vld [vmem:[%s3] sm:$0xf]
        %v755 = vld [vmem:[%s3 + $0x4] sm:$0xf]
        %v756 = vld [vmem:[%s3 + $0x8] sm:$0xf]
        %v757 = vld [vmem:[%s3 + $0xc] sm:$0xf]
        %v758 = vld [vmem:[%s3 + $0x10] sm:$0xf]
        %v759 = vld [vmem:[%s3 + $0x14] sm:$0xf]
        %v760 = vld [vmem:[%s3 + $0x18] sm:$0xf]
        %v761 = vld [vmem:[%s3 + $0x1c] sm:$0xf]
        %s762 = scalar_lea.vmem %s2, 64
        %v763 = vld [vmem:[%s762] sm:$0xff]
        %v764 = vld [vmem:[%s762 + $0x8] sm:$0xff]
        %v765 = vld [vmem:[%s762 + $0x10] sm:$0xff]
        %v766 = vld [vmem:[%s762 + $0x18] sm:$0xff]
        %v767 = vld [vmem:[%s762 + $0x20] sm:$0xff]
        %v768 = vld [vmem:[%s762 + $0x28] sm:$0xff]
        %v769 = vld [vmem:[%s762 + $0x30] sm:$0xff]
        %v770 = vld [vmem:[%s762 + $0x38] sm:$0xff]
        %772 = vset.pattern.permute.xlu0 0
        %773 = vperm.xlu0 %772, %v763
        %v774 = vpop.permute.xlu0 %773
        %777 = vset.pattern.permute.xlu0 0
        %778 = vperm.xlu0 %777, %v764
        %v779 = vpop.permute.xlu0 %778
        %782 = vset.pattern.permute.xlu0 0
        %783 = vperm.xlu0 %782, %v765
        %v784 = vpop.permute.xlu0 %783
        %787 = vset.pattern.permute.xlu0 0
        %788 = vperm.xlu0 %787, %v766
        %v789 = vpop.permute.xlu0 %788
        %792 = vset.pattern.permute.xlu0 0
        %793 = vperm.xlu0 %792, %v767
        %v794 = vpop.permute.xlu0 %793
        %797 = vset.pattern.permute.xlu0 0
        %798 = vperm.xlu0 %797, %v768
        %v799 = vpop.permute.xlu0 %798
        %802 = vset.pattern.permute.xlu0 0
        %803 = vperm.xlu0 %802, %v769
        %v804 = vpop.permute.xlu0 %803
        %807 = vset.pattern.permute.xlu0 0
        %808 = vperm.xlu0 %807, %v770
        %v809 = vpop.permute.xlu0 %808
        %v819 = vunpack.c.l.b16 %v754
        %v820 = vunpack.c.l.b16 %v755
        %v821 = vunpack.c.l.b16 %v756
        %v822 = vunpack.c.l.b16 %v757
        %v823 = vunpack.c.l.b16 %v758
        %v824 = vunpack.c.l.b16 %v759
        %v825 = vunpack.c.l.b16 %v760
        %v826 = vunpack.c.l.b16 %v761
        %v827 = vpack.c.b16 %v820, %v819
        %v828 = vpack.c.b16 %v822, %v821
        %v829 = vpack.c.b16 %v824, %v823
        %v830 = vpack.c.b16 %v826, %v825
        %vm831 = vcmask 523264
        %v833 = vsel %vm831, %v827, 0
        %v836 = vsel %vm831, %v828, 0
        %v839 = vsel %vm831, %v829, 0
        %v842 = vsel %vm831, %v830, 0
        %844 = vmatprep.subr.bf16.mxu0 0
        %845 = vmatpush1.bf16.msra.mxu0 0
        %846 = vmatprep.subr.bf16.mxu0 0
        %847 = vmatpush1.bf16.msra.mxu0 0
        %848 = vmatprep.subr.bf16.mxu0 0
        %849 = vmatpush1.bf16.msra.mxu0 0
        %850 = vmatprep.subr.bf16.mxu0 0
        %851 = vmatpush1.bf16.msra.mxu0 0
        %852 = vmatprep.subr.bf16.mxu0 %v753
        %853 = vmatpush1.bf16.msra.mxu0 %v752
        %854 = vmatprep.subr.bf16.mxu0 %v751
        %855 = vmatpush1.bf16.msra.mxu0 %v750
        %856 = vmatprep.subr.bf16.mxu0 %v749
        %857 = vmatpush1.bf16.msra.mxu0 %v748
        %858 = vmatprep.subr.bf16.mxu0 %v747
        %859 = vmatpush1.bf16.msra.mxu0 %v746
        %860 = vmatprep.subr.bf16.mxu0 0
        %861 = vmatpush2.bf16.msra.mxu0 0
        %862 = vmatprep.subr.bf16.mxu0 0
        %863 = vmatpush2.bf16.msra.mxu0 0
        %864 = vmatprep.subr.bf16.mxu0 0
        %865 = vmatpush2.bf16.msra.mxu0 0
        %866 = vmatprep.subr.bf16.mxu0 0
        %867 = vmatpush2.bf16.msra.mxu0 0
        %868 = vmatprep.subr.bf16.mxu0 0
        %869 = vmatpush2.bf16.msra.mxu0 0
        %870 = vmatprep.subr.bf16.mxu0 0
        %871 = vmatpush2.bf16.msra.mxu0 0
        %872 = vmatprep.subr.bf16.mxu0 0
        %873 = vmatpush2.bf16.msra.mxu0 0
        %874 = vmatprep.subr.bf16.mxu0 0
        %875 = vmatpush2.bf16.msra.mxu0 0
        %876 = vmatprep.mubr.bf16.mxu0 0
        %877 = vmatmul.mubr.bf16.gmra.mxu0 %v833
        %v878 = vpop.f32.mrf.mxu0
        %v879 = vadd.f32 %v774, %v878
        %v880 = vpop.f32.mrf.mxu0
        %v881 = vadd.f32 %v774, %v880
        %v882 = vpop.f32.mrf.mxu0
        %v883 = vadd.f32 %v779, %v882
        %v884 = vpop.f32.mrf.mxu0
        %v885 = vadd.f32 %v779, %v884
        %886 = vmatprep.mubr.bf16.mxu0 0
        %887 = vmatmul.mubr.bf16.gmra.mxu0 %v836
        %v888 = vpop.f32.mrf.mxu0
        %v889 = vadd.f32 %v784, %v888
        %v890 = vpop.f32.mrf.mxu0
        %v891 = vadd.f32 %v784, %v890
        %v892 = vpop.f32.mrf.mxu0
        %v893 = vadd.f32 %v789, %v892
        %v894 = vpop.f32.mrf.mxu0
        %v895 = vadd.f32 %v789, %v894
        %896 = vmatprep.mubr.bf16.mxu0 0
        %897 = vmatmul.mubr.bf16.gmra.mxu0 %v839
        %v898 = vpop.f32.mrf.mxu0
        %v899 = vadd.f32 %v794, %v898
        %v900 = vpop.f32.mrf.mxu0
        %v901 = vadd.f32 %v794, %v900
        %v902 = vpop.f32.mrf.mxu0
        %v903 = vadd.f32 %v799, %v902
        %v904 = vpop.f32.mrf.mxu0
        %v905 = vadd.f32 %v799, %v904
        %906 = vmatprep.mubr.bf16.mxu0 0
        %907 = vmatmul.mubr.bf16.gmra.mxu0 %v842
        %v908 = vpop.f32.mrf.mxu0
        %v909 = vadd.f32 %v804, %v908
        %v910 = vpop.f32.mrf.mxu0
        %v911 = vadd.f32 %v804, %v910
        %v912 = vpop.f32.mrf.mxu0
        %v913 = vadd.f32 %v809, %v912
        %v914 = vpop.f32.mrf.mxu0
        %v915 = vadd.f32 %v809, %v914
        %916 = vdwg.mxu0
        %v917 = vmax.f32 %v879, 0.0
        %v918 = vmax.f32 %v881, 0.0
        %v919 = vmax.f32 %v883, 0.0
        %v920 = vmax.f32 %v885, 0.0
        %v921 = vmax.f32 %v889, 0.0
        %v922 = vmax.f32 %v891, 0.0
        %v923 = vmax.f32 %v893, 0.0
        %v924 = vmax.f32 %v895, 0.0
        %v925 = vmax.f32 %v899, 0.0
        %v926 = vmax.f32 %v901, 0.0
        %v927 = vmax.f32 %v903, 0.0
        %v928 = vmax.f32 %v905, 0.0
        %v929 = vmax.f32 %v909, 0.0
        %v930 = vmax.f32 %v911, 0.0
        %v931 = vmax.f32 %v913, 0.0
        %v932 = vmax.f32 %v915, 0.0
        %v933 = vpack.c.bf16 %v919, %v917
        %v934 = vpack.c.bf16 %v920, %v918
        %v935 = vpack.c.bf16 %v923, %v921
        %v936 = vpack.c.bf16 %v924, %v922
        %v937 = vpack.c.bf16 %v927, %v925
        %v938 = vpack.c.bf16 %v928, %v926
        %v939 = vpack.c.bf16 %v931, %v929
        %v940 = vpack.c.bf16 %v932, %v930
        %s941 = scalar_lea.vmem %s3, 32
        %v942 = vld [vmem:[%s941] sm:$0xf]
        %v943 = vld [vmem:[%s941 + $0x4] sm:$0xf]
        %v944 = vld [vmem:[%s941 + $0x8] sm:$0xf]
        %v945 = vld [vmem:[%s941 + $0xc] sm:$0xf]
        %v946 = vld [vmem:[%s941 + $0x10] sm:$0xf]
        %v947 = vld [vmem:[%s941 + $0x14] sm:$0xf]
        %v948 = vld [vmem:[%s941 + $0x18] sm:$0xf]
        %v949 = vld [vmem:[%s941 + $0x1c] sm:$0xf]
        %s950 = scalar_lea.vmem %s2, 128
        %v951 = vld [vmem:[%s950] sm:$0xff]
        %v952 = vld [vmem:[%s950 + $0x8] sm:$0xff]
        %v953 = vld [vmem:[%s950 + $0x10] sm:$0xff]
        %v954 = vld [vmem:[%s950 + $0x18] sm:$0xff]
        %v955 = vld [vmem:[%s950 + $0x20] sm:$0xff]
        %v956 = vld [vmem:[%s950 + $0x28] sm:$0xff]
        %v957 = vld [vmem:[%s950 + $0x30] sm:$0xff]
        %v958 = vld [vmem:[%s950 + $0x38] sm:$0xff]
        %960 = vset.pattern.permute.xlu0 0
        %961 = vperm.xlu0 %960, %v951
        %v962 = vpop.permute.xlu0 %961
        %965 = vset.pattern.permute.xlu0 0
        %966 = vperm.xlu0 %965, %v952
        %v967 = vpop.permute.xlu0 %966
        %970 = vset.pattern.permute.xlu0 0
        %971 = vperm.xlu0 %970, %v953
        %v972 = vpop.permute.xlu0 %971
        %975 = vset.pattern.permute.xlu0 0
        %976 = vperm.xlu0 %975, %v954
        %v977 = vpop.permute.xlu0 %976
        %980 = vset.pattern.permute.xlu0 0
        %981 = vperm.xlu0 %980, %v955
        %v982 = vpop.permute.xlu0 %981
        %985 = vset.pattern.permute.xlu0 0
        %986 = vperm.xlu0 %985, %v956
        %v987 = vpop.permute.xlu0 %986
        %990 = vset.pattern.permute.xlu0 0
        %991 = vperm.xlu0 %990, %v957
        %v992 = vpop.permute.xlu0 %991
        %995 = vset.pattern.permute.xlu0 0
        %996 = vperm.xlu0 %995, %v958
        %v997 = vpop.permute.xlu0 %996
        %v1007 = vunpack.c.l.b16 %v942
        %v1008 = vunpack.c.l.b16 %v943
        %v1009 = vunpack.c.l.b16 %v944
        %v1010 = vunpack.c.l.b16 %v945
        %v1011 = vunpack.c.l.b16 %v946
        %v1012 = vunpack.c.l.b16 %v947
        %v1013 = vunpack.c.l.b16 %v948
        %v1014 = vunpack.c.l.b16 %v949
        %v1015 = vpack.c.b16 %v1008, %v1007
        %v1016 = vpack.c.b16 %v1010, %v1009
        %v1017 = vpack.c.b16 %v1012, %v1011
        %v1018 = vpack.c.b16 %v1014, %v1013
        %v1020 = vsel %vm831, %v1015, 0
        %v1023 = vsel %vm831, %v1016, 0
        %v1026 = vsel %vm831, %v1017, 0
        %v1029 = vsel %vm831, %v1018, 0
        %1031 = vmatprep.subr.bf16.mxu0 0
        %1032 = vmatpush1.bf16.msra.mxu0 0
        %1033 = vmatprep.subr.bf16.mxu0 0
        %1034 = vmatpush1.bf16.msra.mxu0 0
        %1035 = vmatprep.subr.bf16.mxu0 0
        %1036 = vmatpush1.bf16.msra.mxu0 0
        %1037 = vmatprep.subr.bf16.mxu0 0
        %1038 = vmatpush1.bf16.msra.mxu0 0
        %1039 = vmatprep.subr.bf16.mxu0 %v940
        %1040 = vmatpush1.bf16.msra.mxu0 %v939
        %1041 = vmatprep.subr.bf16.mxu0 %v938
        %1042 = vmatpush1.bf16.msra.mxu0 %v937
        %1043 = vmatprep.subr.bf16.mxu0 %v936
        %1044 = vmatpush1.bf16.msra.mxu0 %v935
        %1045 = vmatprep.subr.bf16.mxu0 %v934
        %1046 = vmatpush1.bf16.msra.mxu0 %v933
        %1047 = vmatprep.subr.bf16.mxu0 0
        %1048 = vmatpush2.bf16.msra.mxu0 0
        %1049 = vmatprep.subr.bf16.mxu0 0
        %1050 = vmatpush2.bf16.msra.mxu0 0
        %1051 = vmatprep.subr.bf16.mxu0 0
        %1052 = vmatpush2.bf16.msra.mxu0 0
        %1053 = vmatprep.subr.bf16.mxu0 0
        %1054 = vmatpush2.bf16.msra.mxu0 0
        %1055 = vmatprep.subr.bf16.mxu0 0
        %1056 = vmatpush2.bf16.msra.mxu0 0
        %1057 = vmatprep.subr.bf16.mxu0 0
        %1058 = vmatpush2.bf16.msra.mxu0 0
        %1059 = vmatprep.subr.bf16.mxu0 0
        %1060 = vmatpush2.bf16.msra.mxu0 0
        %1061 = vmatprep.subr.bf16.mxu0 0
        %1062 = vmatpush2.bf16.msra.mxu0 0
        %1063 = vmatprep.mubr.bf16.mxu0 0
        %1064 = vmatmul.mubr.bf16.gmra.mxu0 %v1020
        %v1065 = vpop.f32.mrf.mxu0
        %v1066 = vadd.f32 %v962, %v1065
        %v1067 = vpop.f32.mrf.mxu0
        %v1068 = vadd.f32 %v962, %v1067
        %v1069 = vpop.f32.mrf.mxu0
        %v1070 = vadd.f32 %v967, %v1069
        %v1071 = vpop.f32.mrf.mxu0
        %v1072 = vadd.f32 %v967, %v1071
        %1073 = vmatprep.mubr.bf16.mxu0 0
        %1074 = vmatmul.mubr.bf16.gmra.mxu0 %v1023
        %v1075 = vpop.f32.mrf.mxu0
        %v1076 = vadd.f32 %v972, %v1075
        %v1077 = vpop.f32.mrf.mxu0
        %v1078 = vadd.f32 %v972, %v1077
        %v1079 = vpop.f32.mrf.mxu0
        %v1080 = vadd.f32 %v977, %v1079
        %v1081 = vpop.f32.mrf.mxu0
        %v1082 = vadd.f32 %v977, %v1081
        %1083 = vmatprep.mubr.bf16.mxu0 0
        %1084 = vmatmul.mubr.bf16.gmra.mxu0 %v1026
        %v1085 = vpop.f32.mrf.mxu0
        %v1086 = vadd.f32 %v982, %v1085
        %v1087 = vpop.f32.mrf.mxu0
        %v1088 = vadd.f32 %v982, %v1087
        %v1089 = vpop.f32.mrf.mxu0
        %v1090 = vadd.f32 %v987, %v1089
        %v1091 = vpop.f32.mrf.mxu0
        %v1092 = vadd.f32 %v987, %v1091
        %1093 = vmatprep.mubr.bf16.mxu0 0
        %1094 = vmatmul.mubr.bf16.gmra.mxu0 %v1029
        %v1095 = vpop.f32.mrf.mxu0
        %v1096 = vadd.f32 %v992, %v1095
        %v1097 = vpop.f32.mrf.mxu0
        %v1098 = vadd.f32 %v992, %v1097
        %v1099 = vpop.f32.mrf.mxu0
        %v1100 = vadd.f32 %v997, %v1099
        %v1101 = vpop.f32.mrf.mxu0
        %v1102 = vadd.f32 %v997, %v1101
        %1103 = vdwg.mxu0
        %v1104 = vmax.f32 %v1066, 0.0
        %v1105 = vmax.f32 %v1068, 0.0
        %v1106 = vmax.f32 %v1070, 0.0
        %v1107 = vmax.f32 %v1072, 0.0
        %v1108 = vmax.f32 %v1076, 0.0
        %v1109 = vmax.f32 %v1078, 0.0
        %v1110 = vmax.f32 %v1080, 0.0
        %v1111 = vmax.f32 %v1082, 0.0
        %v1112 = vmax.f32 %v1086, 0.0
        %v1113 = vmax.f32 %v1088, 0.0
        %v1114 = vmax.f32 %v1090, 0.0
        %v1115 = vmax.f32 %v1092, 0.0
        %v1116 = vmax.f32 %v1096, 0.0
        %v1117 = vmax.f32 %v1098, 0.0
        %v1118 = vmax.f32 %v1100, 0.0
        %v1119 = vmax.f32 %v1102, 0.0
        %v1120 = vpack.c.bf16 %v1106, %v1104
        %v1121 = vpack.c.bf16 %v1107, %v1105
        %v1122 = vpack.c.bf16 %v1110, %v1108
        %v1123 = vpack.c.bf16 %v1111, %v1109
        %v1124 = vpack.c.bf16 %v1114, %v1112
        %v1125 = vpack.c.bf16 %v1115, %v1113
        %v1126 = vpack.c.bf16 %v1118, %v1116
        %v1127 = vpack.c.bf16 %v1119, %v1117
        %s1128 = scalar_lea.vmem %s3, 64
        %v1129 = vld [vmem:[%s1128] sm:$0xf]
        %v1130 = vld [vmem:[%s1128 + $0x4] sm:$0xf]
        %v1131 = vld [vmem:[%s1128 + $0x8] sm:$0xf]
        %v1132 = vld [vmem:[%s1128 + $0xc] sm:$0xf]
        %v1133 = vld [vmem:[%s1128 + $0x10] sm:$0xf]
        %v1134 = vld [vmem:[%s1128 + $0x14] sm:$0xf]
        %v1135 = vld [vmem:[%s1128 + $0x18] sm:$0xf]
        %v1136 = vld [vmem:[%s1128 + $0x1c] sm:$0xf]
        %v1137 = vadd.bf16 %v1120, %v746
        %v1138 = vadd.bf16 %v1121, %v747
        %v1139 = vadd.bf16 %v1122, %v748
        %v1140 = vadd.bf16 %v1123, %v749
        %v1141 = vadd.bf16 %v1124, %v750
        %v1142 = vadd.bf16 %v1125, %v751
        %v1143 = vadd.bf16 %v1126, %v752
        %v1144 = vadd.bf16 %v1127, %v753
        %s1145 = scalar_lea.vmem %s2, 192
        %v1146 = vld [vmem:[%s1145] sm:$0xff]
        %v1147 = vld [vmem:[%s1145 + $0x8] sm:$0xff]
        %v1148 = vld [vmem:[%s1145 + $0x10] sm:$0xff]
        %v1149 = vld [vmem:[%s1145 + $0x18] sm:$0xff]
        %v1150 = vld [vmem:[%s1145 + $0x20] sm:$0xff]
        %v1151 = vld [vmem:[%s1145 + $0x28] sm:$0xff]
        %v1152 = vld [vmem:[%s1145 + $0x30] sm:$0xff]
        %v1153 = vld [vmem:[%s1145 + $0x38] sm:$0xff]
        %1155 = vset.pattern.permute.xlu0 0
        %1156 = vperm.xlu0 %1155, %v1146
        %v1157 = vpop.permute.xlu0 %1156
        %1160 = vset.pattern.permute.xlu0 0
        %1161 = vperm.xlu0 %1160, %v1147
        %v1162 = vpop.permute.xlu0 %1161
        %1165 = vset.pattern.permute.xlu0 0
        %1166 = vperm.xlu0 %1165, %v1148
        %v1167 = vpop.permute.xlu0 %1166
        %1170 = vset.pattern.permute.xlu0 0
        %1171 = vperm.xlu0 %1170, %v1149
        %v1172 = vpop.permute.xlu0 %1171
        %1175 = vset.pattern.permute.xlu0 0
        %1176 = vperm.xlu0 %1175, %v1150
        %v1177 = vpop.permute.xlu0 %1176
        %1180 = vset.pattern.permute.xlu0 0
        %1181 = vperm.xlu0 %1180, %v1151
        %v1182 = vpop.permute.xlu0 %1181
        %1185 = vset.pattern.permute.xlu0 0
        %1186 = vperm.xlu0 %1185, %v1152
        %v1187 = vpop.permute.xlu0 %1186
        %1190 = vset.pattern.permute.xlu0 0
        %1191 = vperm.xlu0 %1190, %v1153
        %v1192 = vpop.permute.xlu0 %1191
        %v1202 = vunpack.c.l.b16 %v1129
        %v1203 = vunpack.c.l.b16 %v1130
        %v1204 = vunpack.c.l.b16 %v1131
        %v1205 = vunpack.c.l.b16 %v1132
        %v1206 = vunpack.c.l.b16 %v1133
        %v1207 = vunpack.c.l.b16 %v1134
        %v1208 = vunpack.c.l.b16 %v1135
        %v1209 = vunpack.c.l.b16 %v1136
        %v1210 = vpack.c.b16 %v1203, %v1202
        %v1211 = vpack.c.b16 %v1205, %v1204
        %v1212 = vpack.c.b16 %v1207, %v1206
        %v1213 = vpack.c.b16 %v1209, %v1208
        %v1215 = vsel %vm831, %v1210, 0
        %v1218 = vsel %vm831, %v1211, 0
        %v1221 = vsel %vm831, %v1212, 0
        %v1224 = vsel %vm831, %v1213, 0
        %1226 = vmatprep.subr.bf16.mxu0 0
        %1227 = vmatpush1.bf16.msra.mxu0 0
        %1228 = vmatprep.subr.bf16.mxu0 0
        %1229 = vmatpush1.bf16.msra.mxu0 0
        %1230 = vmatprep.subr.bf16.mxu0 0
        %1231 = vmatpush1.bf16.msra.mxu0 0
        %1232 = vmatprep.subr.bf16.mxu0 0
        %1233 = vmatpush1.bf16.msra.mxu0 0
        %1234 = vmatprep.subr.bf16.mxu0 %v1144
        %1235 = vmatpush1.bf16.msra.mxu0 %v1143
        %1236 = vmatprep.subr.bf16.mxu0 %v1142
        %1237 = vmatpush1.bf16.msra.mxu0 %v1141
        %1238 = vmatprep.subr.bf16.mxu0 %v1140
        %1239 = vmatpush1.bf16.msra.mxu0 %v1139
        %1240 = vmatprep.subr.bf16.mxu0 %v1138
        %1241 = vmatpush1.bf16.msra.mxu0 %v1137
        %1242 = vmatprep.subr.bf16.mxu0 0
        %1243 = vmatpush2.bf16.msra.mxu0 0
        %1244 = vmatprep.subr.bf16.mxu0 0
        %1245 = vmatpush2.bf16.msra.mxu0 0
        %1246 = vmatprep.subr.bf16.mxu0 0
        %1247 = vmatpush2.bf16.msra.mxu0 0
        %1248 = vmatprep.subr.bf16.mxu0 0
        %1249 = vmatpush2.bf16.msra.mxu0 0
        %1250 = vmatprep.subr.bf16.mxu0 0
        %1251 = vmatpush2.bf16.msra.mxu0 0
        %1252 = vmatprep.subr.bf16.mxu0 0
        %1253 = vmatpush2.bf16.msra.mxu0 0
        %1254 = vmatprep.subr.bf16.mxu0 0
        %1255 = vmatpush2.bf16.msra.mxu0 0
        %1256 = vmatprep.subr.bf16.mxu0 0
        %1257 = vmatpush2.bf16.msra.mxu0 0
        %1258 = vmatprep.mubr.bf16.mxu0 0
        %1259 = vmatmul.mubr.bf16.gmra.mxu0 %v1215
        %v1260 = vpop.f32.mrf.mxu0
        %v1261 = vadd.f32 %v1157, %v1260
        %v1262 = vpop.f32.mrf.mxu0
        %v1263 = vadd.f32 %v1157, %v1262
        %v1264 = vpop.f32.mrf.mxu0
        %v1265 = vadd.f32 %v1162, %v1264
        %v1266 = vpop.f32.mrf.mxu0
        %v1267 = vadd.f32 %v1162, %v1266
        %1268 = vmatprep.mubr.bf16.mxu0 0
        %1269 = vmatmul.mubr.bf16.gmra.mxu0 %v1218
        %v1270 = vpop.f32.mrf.mxu0
        %v1271 = vadd.f32 %v1167, %v1270
        %v1272 = vpop.f32.mrf.mxu0
        %v1273 = vadd.f32 %v1167, %v1272
        %v1274 = vpop.f32.mrf.mxu0
        %v1275 = vadd.f32 %v1172, %v1274
        %v1276 = vpop.f32.mrf.mxu0
        %v1277 = vadd.f32 %v1172, %v1276
        %1278 = vmatprep.mubr.bf16.mxu0 0
        %1279 = vmatmul.mubr.bf16.gmra.mxu0 %v1221
        %v1280 = vpop.f32.mrf.mxu0
        %v1281 = vadd.f32 %v1177, %v1280
        %v1282 = vpop.f32.mrf.mxu0
        %v1283 = vadd.f32 %v1177, %v1282
        %v1284 = vpop.f32.mrf.mxu0
        %v1285 = vadd.f32 %v1182, %v1284
        %v1286 = vpop.f32.mrf.mxu0
        %v1287 = vadd.f32 %v1182, %v1286
        %1288 = vmatprep.mubr.bf16.mxu0 0
        %1289 = vmatmul.mubr.bf16.gmra.mxu0 %v1224
        %v1290 = vpop.f32.mrf.mxu0
        %v1291 = vadd.f32 %v1187, %v1290
        %v1292 = vpop.f32.mrf.mxu0
        %v1293 = vadd.f32 %v1187, %v1292
        %v1294 = vpop.f32.mrf.mxu0
        %v1295 = vadd.f32 %v1192, %v1294
        %v1296 = vpop.f32.mrf.mxu0
        %v1297 = vadd.f32 %v1192, %v1296
        %1298 = vdwg.mxu0
        %v1299 = vmax.f32 %v1261, 0.0
        %v1300 = vmax.f32 %v1263, 0.0
        %v1301 = vmax.f32 %v1265, 0.0
        %v1302 = vmax.f32 %v1267, 0.0
        %v1303 = vmax.f32 %v1271, 0.0
        %v1304 = vmax.f32 %v1273, 0.0
        %v1305 = vmax.f32 %v1275, 0.0
        %v1306 = vmax.f32 %v1277, 0.0
        %v1307 = vmax.f32 %v1281, 0.0
        %v1308 = vmax.f32 %v1283, 0.0
        %v1309 = vmax.f32 %v1285, 0.0
        %v1310 = vmax.f32 %v1287, 0.0
        %v1311 = vmax.f32 %v1291, 0.0
        %v1312 = vmax.f32 %v1293, 0.0
        %v1313 = vmax.f32 %v1295, 0.0
        %v1314 = vmax.f32 %v1297, 0.0
        %v1315 = vpack.c.bf16 %v1301, %v1299
        %v1316 = vpack.c.bf16 %v1302, %v1300
        %v1317 = vpack.c.bf16 %v1305, %v1303
        %v1318 = vpack.c.bf16 %v1306, %v1304
        %v1319 = vpack.c.bf16 %v1309, %v1307
        %v1320 = vpack.c.bf16 %v1310, %v1308
        %v1321 = vpack.c.bf16 %v1313, %v1311
        %v1322 = vpack.c.bf16 %v1314, %v1312
        %v1323 = vld [vmem:[%s4] sm:$0xf]
        %v1324 = vld [vmem:[%s4 + $0x4] sm:$0xf]
        %v1325 = vld [vmem:[%s4 + $0x8] sm:$0xf]
        %v1326 = vld [vmem:[%s4 + $0xc] sm:$0xf]
        %v1327 = vld [vmem:[%s4 + $0x10] sm:$0xf]
        %v1328 = vld [vmem:[%s4 + $0x14] sm:$0xf]
        %v1329 = vld [vmem:[%s4 + $0x18] sm:$0xf]
        %v1330 = vld [vmem:[%s4 + $0x1c] sm:$0xf]
        %v1331 = vld [vmem:[%s4 + $0x20] sm:$0xf]
        %v1332 = vld [vmem:[%s4 + $0x24] sm:$0xf]
        %v1333 = vld [vmem:[%s4 + $0x28] sm:$0xf]
        %v1334 = vld [vmem:[%s4 + $0x2c] sm:$0xf]
        %v1335 = vld [vmem:[%s4 + $0x30] sm:$0xf]
        %v1336 = vld [vmem:[%s4 + $0x34] sm:$0xf]
        %v1337 = vld [vmem:[%s4 + $0x38] sm:$0xf]
        %v1338 = vld [vmem:[%s4 + $0x3c] sm:$0xf]
        %v1339 = vld [vmem:[%s7] sm:$0xff]
        %v1340 = vld [vmem:[%s7 + $0x8] sm:$0xff]
        %v1341 = vld [vmem:[%s7 + $0x10] sm:$0xff]
        %v1342 = vld [vmem:[%s7 + $0x18] sm:$0xff]
        %v1343 = vld [vmem:[%s7 + $0x20] sm:$0xff]
        %v1344 = vld [vmem:[%s7 + $0x28] sm:$0xff]
        %v1345 = vld [vmem:[%s7 + $0x30] sm:$0xff]
        %v1346 = vld [vmem:[%s7 + $0x38] sm:$0xff]
        %v1347 = vld [vmem:[%s7 + $0x40] sm:$0xff]
        %v1348 = vld [vmem:[%s7 + $0x48] sm:$0xff]
        %v1349 = vld [vmem:[%s7 + $0x50] sm:$0xff]
        %v1350 = vld [vmem:[%s7 + $0x58] sm:$0xff]
        %v1351 = vld [vmem:[%s7 + $0x60] sm:$0xff]
        %v1352 = vld [vmem:[%s7 + $0x68] sm:$0xff]
        %v1353 = vld [vmem:[%s7 + $0x70] sm:$0xff]
        %v1354 = vld [vmem:[%s7 + $0x78] sm:$0xff]
        %1356 = vset.pattern.permute.xlu0 0
        %1357 = vperm.xlu0 %1356, %v1339
        %v1358 = vpop.permute.xlu0 %1357
        %1361 = vset.pattern.permute.xlu0 0
        %1362 = vperm.xlu0 %1361, %v1340
        %v1363 = vpop.permute.xlu0 %1362
        %1366 = vset.pattern.permute.xlu0 0
        %1367 = vperm.xlu0 %1366, %v1341
        %v1368 = vpop.permute.xlu0 %1367
        %1371 = vset.pattern.permute.xlu0 0
        %1372 = vperm.xlu0 %1371, %v1342
        %v1373 = vpop.permute.xlu0 %1372
        %1376 = vset.pattern.permute.xlu0 0
        %1377 = vperm.xlu0 %1376, %v1343
        %v1378 = vpop.permute.xlu0 %1377
        %1381 = vset.pattern.permute.xlu0 0
        %1382 = vperm.xlu0 %1381, %v1344
        %v1383 = vpop.permute.xlu0 %1382
        %1386 = vset.pattern.permute.xlu0 0
        %1387 = vperm.xlu0 %1386, %v1345
        %v1388 = vpop.permute.xlu0 %1387
        %1391 = vset.pattern.permute.xlu0 0
        %1392 = vperm.xlu0 %1391, %v1346
        %v1393 = vpop.permute.xlu0 %1392
        %1396 = vset.pattern.permute.xlu0 0
        %1397 = vperm.xlu0 %1396, %v1347
        %v1398 = vpop.permute.xlu0 %1397
        %1401 = vset.pattern.permute.xlu0 0
        %1402 = vperm.xlu0 %1401, %v1348
        %v1403 = vpop.permute.xlu0 %1402
        %1406 = vset.pattern.permute.xlu0 0
        %1407 = vperm.xlu0 %1406, %v1349
        %v1408 = vpop.permute.xlu0 %1407
        %1411 = vset.pattern.permute.xlu0 0
        %1412 = vperm.xlu0 %1411, %v1350
        %v1413 = vpop.permute.xlu0 %1412
        %1416 = vset.pattern.permute.xlu0 0
        %1417 = vperm.xlu0 %1416, %v1351
        %v1418 = vpop.permute.xlu0 %1417
        %1421 = vset.pattern.permute.xlu0 0
        %1422 = vperm.xlu0 %1421, %v1352
        %v1423 = vpop.permute.xlu0 %1422
        %1426 = vset.pattern.permute.xlu0 0
        %1427 = vperm.xlu0 %1426, %v1353
        %v1428 = vpop.permute.xlu0 %1427
        %1431 = vset.pattern.permute.xlu0 0
        %1432 = vperm.xlu0 %1431, %v1354
        %v1433 = vpop.permute.xlu0 %1432
        %v1451 = vunpack.c.l.b16 %v1323
        %v1452 = vunpack.c.l.b16 %v1324
        %v1453 = vunpack.c.l.b16 %v1325
        %v1454 = vunpack.c.l.b16 %v1326
        %v1455 = vunpack.c.l.b16 %v1327
        %v1456 = vunpack.c.l.b16 %v1328
        %v1457 = vunpack.c.l.b16 %v1329
        %v1458 = vunpack.c.l.b16 %v1330
        %v1459 = vunpack.c.l.b16 %v1331
        %v1460 = vunpack.c.l.b16 %v1332
        %v1461 = vunpack.c.l.b16 %v1333
        %v1462 = vunpack.c.l.b16 %v1334
        %v1463 = vunpack.c.l.b16 %v1335
        %v1464 = vunpack.c.l.b16 %v1336
        %v1465 = vunpack.c.l.b16 %v1337
        %v1466 = vunpack.c.l.b16 %v1338
        %v1467 = vpack.c.b16 %v1452, %v1451
        %v1468 = vpack.c.b16 %v1454, %v1453
        %v1469 = vpack.c.b16 %v1456, %v1455
        %v1470 = vpack.c.b16 %v1458, %v1457
        %v1471 = vpack.c.b16 %v1460, %v1459
        %v1472 = vpack.c.b16 %v1462, %v1461
        %v1473 = vpack.c.b16 %v1464, %v1463
        %v1474 = vpack.c.b16 %v1466, %v1465
        %v1476 = vsel %vm831, %v1467, 0
        %v1479 = vsel %vm831, %v1468, 0
        %v1482 = vsel %vm831, %v1469, 0
        %v1485 = vsel %vm831, %v1470, 0
        %v1488 = vsel %vm831, %v1471, 0
        %v1491 = vsel %vm831, %v1472, 0
        %v1494 = vsel %vm831, %v1473, 0
        %v1497 = vsel %vm831, %v1474, 0
        %1499 = vmatprep.subr.bf16.mxu0 0
        %1500 = vmatpush1.bf16.msra.mxu0 0
        %1501 = vmatprep.subr.bf16.mxu0 0
        %1502 = vmatpush1.bf16.msra.mxu0 0
        %1503 = vmatprep.subr.bf16.mxu0 0
        %1504 = vmatpush1.bf16.msra.mxu0 0
        %1505 = vmatprep.subr.bf16.mxu0 0
        %1506 = vmatpush1.bf16.msra.mxu0 0
        %1507 = vmatprep.subr.bf16.mxu0 %v1322
        %1508 = vmatpush1.bf16.msra.mxu0 %v1321
        %1509 = vmatprep.subr.bf16.mxu0 %v1320
        %1510 = vmatpush1.bf16.msra.mxu0 %v1319
        %1511 = vmatprep.subr.bf16.mxu0 %v1318
        %1512 = vmatpush1.bf16.msra.mxu0 %v1317
        %1513 = vmatprep.subr.bf16.mxu0 %v1316
        %1514 = vmatpush1.bf16.msra.mxu0 %v1315
        %1515 = vmatprep.subr.bf16.mxu0 0
        %1516 = vmatpush2.bf16.msra.mxu0 0
        %1517 = vmatprep.subr.bf16.mxu0 0
        %1518 = vmatpush2.bf16.msra.mxu0 0
        %1519 = vmatprep.subr.bf16.mxu0 0
        %1520 = vmatpush2.bf16.msra.mxu0 0
        %1521 = vmatprep.subr.bf16.mxu0 0
        %1522 = vmatpush2.bf16.msra.mxu0 0
        %1523 = vmatprep.subr.bf16.mxu0 0
        %1524 = vmatpush2.bf16.msra.mxu0 0
        %1525 = vmatprep.subr.bf16.mxu0 0
        %1526 = vmatpush2.bf16.msra.mxu0 0
        %1527 = vmatprep.subr.bf16.mxu0 0
        %1528 = vmatpush2.bf16.msra.mxu0 0
        %1529 = vmatprep.subr.bf16.mxu0 0
        %1530 = vmatpush2.bf16.msra.mxu0 0
        %1531 = vmatprep.mubr.bf16.mxu0 0
        %1532 = vmatmul.mubr.bf16.gmra.mxu0 %v1476
        %v1533 = vpop.f32.mrf.mxu0
        %v1534 = vadd.f32 %v1358, %v1533
        %v1535 = vpop.f32.mrf.mxu0
        %v1536 = vadd.f32 %v1358, %v1535
        %v1537 = vpop.f32.mrf.mxu0
        %v1538 = vadd.f32 %v1363, %v1537
        %v1539 = vpop.f32.mrf.mxu0
        %v1540 = vadd.f32 %v1363, %v1539
        %1541 = vmatprep.mubr.bf16.mxu0 0
        %1542 = vmatmul.mubr.bf16.gmra.mxu0 %v1479
        %v1543 = vpop.f32.mrf.mxu0
        %v1544 = vadd.f32 %v1368, %v1543
        %v1545 = vpop.f32.mrf.mxu0
        %v1546 = vadd.f32 %v1368, %v1545
        %v1547 = vpop.f32.mrf.mxu0
        %v1548 = vadd.f32 %v1373, %v1547
        %v1549 = vpop.f32.mrf.mxu0
        %v1550 = vadd.f32 %v1373, %v1549
        %1551 = vmatprep.mubr.bf16.mxu0 0
        %1552 = vmatmul.mubr.bf16.gmra.mxu0 %v1482
        %v1553 = vpop.f32.mrf.mxu0
        %v1554 = vadd.f32 %v1378, %v1553
        %v1555 = vpop.f32.mrf.mxu0
        %v1556 = vadd.f32 %v1378, %v1555
        %v1557 = vpop.f32.mrf.mxu0
        %v1558 = vadd.f32 %v1383, %v1557
        %v1559 = vpop.f32.mrf.mxu0
        %v1560 = vadd.f32 %v1383, %v1559
        %1561 = vmatprep.mubr.bf16.mxu0 0
        %1562 = vmatmul.mubr.bf16.gmra.mxu0 %v1485
        %v1563 = vpop.f32.mrf.mxu0
        %v1564 = vadd.f32 %v1388, %v1563
        %v1565 = vpop.f32.mrf.mxu0
        %v1566 = vadd.f32 %v1388, %v1565
        %v1567 = vpop.f32.mrf.mxu0
        %v1568 = vadd.f32 %v1393, %v1567
        %v1569 = vpop.f32.mrf.mxu0
        %v1570 = vadd.f32 %v1393, %v1569
        %1571 = vmatprep.mubr.bf16.mxu0 0
        %1572 = vmatmul.mubr.bf16.gmra.mxu0 %v1488
        %v1573 = vpop.f32.mrf.mxu0
        %v1574 = vadd.f32 %v1398, %v1573
        %v1575 = vpop.f32.mrf.mxu0
        %v1576 = vadd.f32 %v1398, %v1575
        %v1577 = vpop.f32.mrf.mxu0
        %v1578 = vadd.f32 %v1403, %v1577
        %v1579 = vpop.f32.mrf.mxu0
        %v1580 = vadd.f32 %v1403, %v1579
        %1581 = vmatprep.mubr.bf16.mxu0 0
        %1582 = vmatmul.mubr.bf16.gmra.mxu0 %v1491
        %v1583 = vpop.f32.mrf.mxu0
        %v1584 = vadd.f32 %v1408, %v1583
        %v1585 = vpop.f32.mrf.mxu0
        %v1586 = vadd.f32 %v1408, %v1585
        %v1587 = vpop.f32.mrf.mxu0
        %v1588 = vadd.f32 %v1413, %v1587
        %v1589 = vpop.f32.mrf.mxu0
        %v1590 = vadd.f32 %v1413, %v1589
        %1591 = vmatprep.mubr.bf16.mxu0 0
        %1592 = vmatmul.mubr.bf16.gmra.mxu0 %v1494
        %v1593 = vpop.f32.mrf.mxu0
        %v1594 = vadd.f32 %v1418, %v1593
        %v1595 = vpop.f32.mrf.mxu0
        %v1596 = vadd.f32 %v1418, %v1595
        %v1597 = vpop.f32.mrf.mxu0
        %v1598 = vadd.f32 %v1423, %v1597
        %v1599 = vpop.f32.mrf.mxu0
        %v1600 = vadd.f32 %v1423, %v1599
        %1601 = vmatprep.mubr.bf16.mxu0 0
        %1602 = vmatmul.mubr.bf16.gmra.mxu0 %v1497
        %v1603 = vpop.f32.mrf.mxu0
        %v1604 = vadd.f32 %v1428, %v1603
        %v1605 = vpop.f32.mrf.mxu0
        %v1606 = vadd.f32 %v1428, %v1605
        %v1607 = vpop.f32.mrf.mxu0
        %v1608 = vadd.f32 %v1433, %v1607
        %v1609 = vpop.f32.mrf.mxu0
        %v1610 = vadd.f32 %v1433, %v1609
        %1611 = vdwg.mxu0
        %v1612 = vmax.f32 %v1534, 0.0
        %v1613 = vmax.f32 %v1536, 0.0
        %v1614 = vmax.f32 %v1538, 0.0
        %v1615 = vmax.f32 %v1540, 0.0
        %v1616 = vmax.f32 %v1544, 0.0
        %v1617 = vmax.f32 %v1546, 0.0
        %v1618 = vmax.f32 %v1548, 0.0
        %v1619 = vmax.f32 %v1550, 0.0
        %v1620 = vmax.f32 %v1554, 0.0
        %v1621 = vmax.f32 %v1556, 0.0
        %v1622 = vmax.f32 %v1558, 0.0
        %v1623 = vmax.f32 %v1560, 0.0
        %v1624 = vmax.f32 %v1564, 0.0
        %v1625 = vmax.f32 %v1566, 0.0
        %v1626 = vmax.f32 %v1568, 0.0
        %v1627 = vmax.f32 %v1570, 0.0
        %v1628 = vmax.f32 %v1574, 0.0
        %v1629 = vmax.f32 %v1576, 0.0
        %v1630 = vmax.f32 %v1578, 0.0
        %v1631 = vmax.f32 %v1580, 0.0
        %v1632 = vmax.f32 %v1584, 0.0
        %v1633 = vmax.f32 %v1586, 0.0
        %v1634 = vmax.f32 %v1588, 0.0
        %v1635 = vmax.f32 %v1590, 0.0
        %v1636 = vmax.f32 %v1594, 0.0
        %v1637 = vmax.f32 %v1596, 0.0
        %v1638 = vmax.f32 %v1598, 0.0
        %v1639 = vmax.f32 %v1600, 0.0
        %v1640 = vmax.f32 %v1604, 0.0
        %v1641 = vmax.f32 %v1606, 0.0
        %v1642 = vmax.f32 %v1608, 0.0
        %v1643 = vmax.f32 %v1610, 0.0
        %v1644 = vpack.c.bf16 %v1614, %v1612
        %v1645 = vpack.c.bf16 %v1615, %v1613
        %v1646 = vpack.c.bf16 %v1618, %v1616
        %v1647 = vpack.c.bf16 %v1619, %v1617
        %v1648 = vpack.c.bf16 %v1622, %v1620
        %v1649 = vpack.c.bf16 %v1623, %v1621
        %v1650 = vpack.c.bf16 %v1626, %v1624
        %v1651 = vpack.c.bf16 %v1627, %v1625
        %v1652 = vpack.c.bf16 %v1630, %v1628
        %v1653 = vpack.c.bf16 %v1631, %v1629
        %v1654 = vpack.c.bf16 %v1634, %v1632
        %v1655 = vpack.c.bf16 %v1635, %v1633
        %v1656 = vpack.c.bf16 %v1638, %v1636
        %v1657 = vpack.c.bf16 %v1639, %v1637
        %v1658 = vpack.c.bf16 %v1642, %v1640
        %v1659 = vpack.c.bf16 %v1643, %v1641
        %v1660 = vld [vmem:[%s5] sm:$0xf]
        %v1661 = vld [vmem:[%s5 + $0x4] sm:$0xf]
        %v1662 = vld [vmem:[%s5 + $0x8] sm:$0xf]
        %v1663 = vld [vmem:[%s5 + $0xc] sm:$0xf]
        %v1664 = vld [vmem:[%s5 + $0x10] sm:$0xf]
        %v1665 = vld [vmem:[%s5 + $0x14] sm:$0xf]
        %v1666 = vld [vmem:[%s5 + $0x18] sm:$0xf]
        %v1667 = vld [vmem:[%s5 + $0x1c] sm:$0xf]
        %v1668 = vld [vmem:[%s5 + $0x20] sm:$0xf]
        %v1669 = vld [vmem:[%s5 + $0x24] sm:$0xf]
        %v1670 = vld [vmem:[%s5 + $0x28] sm:$0xf]
        %v1671 = vld [vmem:[%s5 + $0x2c] sm:$0xf]
        %v1672 = vld [vmem:[%s5 + $0x30] sm:$0xf]
        %v1673 = vld [vmem:[%s5 + $0x34] sm:$0xf]
        %v1674 = vld [vmem:[%s5 + $0x38] sm:$0xf]
        %v1675 = vld [vmem:[%s5 + $0x3c] sm:$0xf]
        %s1676 = scalar_lea.vmem %s7, 128
        %v1677 = vld [vmem:[%s1676] sm:$0xff]
        %v1678 = vld [vmem:[%s1676 + $0x8] sm:$0xff]
        %v1679 = vld [vmem:[%s1676 + $0x10] sm:$0xff]
        %v1680 = vld [vmem:[%s1676 + $0x18] sm:$0xff]
        %v1681 = vld [vmem:[%s1676 + $0x20] sm:$0xff]
        %v1682 = vld [vmem:[%s1676 + $0x28] sm:$0xff]
        %v1683 = vld [vmem:[%s1676 + $0x30] sm:$0xff]
        %v1684 = vld [vmem:[%s1676 + $0x38] sm:$0xff]
        %v1685 = vld [vmem:[%s1676 + $0x40] sm:$0xff]
        %v1686 = vld [vmem:[%s1676 + $0x48] sm:$0xff]
        %v1687 = vld [vmem:[%s1676 + $0x50] sm:$0xff]
        %v1688 = vld [vmem:[%s1676 + $0x58] sm:$0xff]
        %v1689 = vld [vmem:[%s1676 + $0x60] sm:$0xff]
        %v1690 = vld [vmem:[%s1676 + $0x68] sm:$0xff]
        %v1691 = vld [vmem:[%s1676 + $0x70] sm:$0xff]
        %v1692 = vld [vmem:[%s1676 + $0x78] sm:$0xff]
        %1694 = vset.pattern.permute.xlu0 0
        %1695 = vperm.xlu0 %1694, %v1677
        %v1696 = vpop.permute.xlu0 %1695
        %1699 = vset.pattern.permute.xlu0 0
        %1700 = vperm.xlu0 %1699, %v1678
        %v1701 = vpop.permute.xlu0 %1700
        %1704 = vset.pattern.permute.xlu0 0
        %1705 = vperm.xlu0 %1704, %v1679
        %v1706 = vpop.permute.xlu0 %1705
        %1709 = vset.pattern.permute.xlu0 0
        %1710 = vperm.xlu0 %1709, %v1680
        %v1711 = vpop.permute.xlu0 %1710
        %1714 = vset.pattern.permute.xlu0 0
        %1715 = vperm.xlu0 %1714, %v1681
        %v1716 = vpop.permute.xlu0 %1715
        %1719 = vset.pattern.permute.xlu0 0
        %1720 = vperm.xlu0 %1719, %v1682
        %v1721 = vpop.permute.xlu0 %1720
        %1724 = vset.pattern.permute.xlu0 0
        %1725 = vperm.xlu0 %1724, %v1683
        %v1726 = vpop.permute.xlu0 %1725
        %1729 = vset.pattern.permute.xlu0 0
        %1730 = vperm.xlu0 %1729, %v1684
        %v1731 = vpop.permute.xlu0 %1730
        %1734 = vset.pattern.permute.xlu0 0
        %1735 = vperm.xlu0 %1734, %v1685
        %v1736 = vpop.permute.xlu0 %1735
        %1739 = vset.pattern.permute.xlu0 0
        %1740 = vperm.xlu0 %1739, %v1686
        %v1741 = vpop.permute.xlu0 %1740
        %1744 = vset.pattern.permute.xlu0 0
        %1745 = vperm.xlu0 %1744, %v1687
        %v1746 = vpop.permute.xlu0 %1745
        %1749 = vset.pattern.permute.xlu0 0
        %1750 = vperm.xlu0 %1749, %v1688
        %v1751 = vpop.permute.xlu0 %1750
        %1754 = vset.pattern.permute.xlu0 0
        %1755 = vperm.xlu0 %1754, %v1689
        %v1756 = vpop.permute.xlu0 %1755
        %1759 = vset.pattern.permute.xlu0 0
        %1760 = vperm.xlu0 %1759, %v1690
        %v1761 = vpop.permute.xlu0 %1760
        %1764 = vset.pattern.permute.xlu0 0
        %1765 = vperm.xlu0 %1764, %v1691
        %v1766 = vpop.permute.xlu0 %1765
        %1769 = vset.pattern.permute.xlu0 0
        %1770 = vperm.xlu0 %1769, %v1692
        %v1771 = vpop.permute.xlu0 %1770
        %v1789 = vunpack.c.l.b16 %v1660
        %v1790 = vunpack.c.l.b16 %v1661
        %v1791 = vunpack.c.l.b16 %v1662
        %v1792 = vunpack.c.l.b16 %v1663
        %v1793 = vunpack.c.l.b16 %v1664
        %v1794 = vunpack.c.l.b16 %v1665
        %v1795 = vunpack.c.l.b16 %v1666
        %v1796 = vunpack.c.l.b16 %v1667
        %v1797 = vunpack.c.l.b16 %v1668
        %v1798 = vunpack.c.l.b16 %v1669
        %v1799 = vunpack.c.l.b16 %v1670
        %v1800 = vunpack.c.l.b16 %v1671
        %v1801 = vunpack.c.l.b16 %v1672
        %v1802 = vunpack.c.l.b16 %v1673
        %v1803 = vunpack.c.l.b16 %v1674
        %v1804 = vunpack.c.l.b16 %v1675
        %v1805 = vpack.c.b16 %v1790, %v1789
        %v1806 = vpack.c.b16 %v1792, %v1791
        %v1807 = vpack.c.b16 %v1794, %v1793
        %v1808 = vpack.c.b16 %v1796, %v1795
        %v1809 = vpack.c.b16 %v1798, %v1797
        %v1810 = vpack.c.b16 %v1800, %v1799
        %v1811 = vpack.c.b16 %v1802, %v1801
        %v1812 = vpack.c.b16 %v1804, %v1803
        %1821 = vmatprep.subr.bf16.mxu0 %v1659
        %1822 = vmatpush1.bf16.msra.mxu0 %v1658
        %1823 = vmatprep.subr.bf16.mxu0 %v1657
        %1824 = vmatpush1.bf16.msra.mxu0 %v1656
        %1825 = vmatprep.subr.bf16.mxu0 %v1655
        %1826 = vmatpush1.bf16.msra.mxu0 %v1654
        %1827 = vmatprep.subr.bf16.mxu0 %v1653
        %1828 = vmatpush1.bf16.msra.mxu0 %v1652
        %1829 = vmatprep.subr.bf16.mxu0 %v1651
        %1830 = vmatpush1.bf16.msra.mxu0 %v1650
        %1831 = vmatprep.subr.bf16.mxu0 %v1649
        %1832 = vmatpush1.bf16.msra.mxu0 %v1648
        %1833 = vmatprep.subr.bf16.mxu0 %v1647
        %1834 = vmatpush1.bf16.msra.mxu0 %v1646
        %1835 = vmatprep.subr.bf16.mxu0 %v1645
        %1836 = vmatpush1.bf16.msra.mxu0 %v1644
        %1837 = vmatprep.subr.bf16.mxu0 0
        %1838 = vmatpush2.bf16.msra.mxu0 0
        %1839 = vmatprep.subr.bf16.mxu0 0
        %1840 = vmatpush2.bf16.msra.mxu0 0
        %1841 = vmatprep.subr.bf16.mxu0 0
        %1842 = vmatpush2.bf16.msra.mxu0 0
        %1843 = vmatprep.subr.bf16.mxu0 0
        %1844 = vmatpush2.bf16.msra.mxu0 0
        %1845 = vmatprep.subr.bf16.mxu0 0
        %1846 = vmatpush2.bf16.msra.mxu0 0
        %1847 = vmatprep.subr.bf16.mxu0 0
        %1848 = vmatpush2.bf16.msra.mxu0 0
        %1849 = vmatprep.subr.bf16.mxu0 0
        %1850 = vmatpush2.bf16.msra.mxu0 0
        %1851 = vmatprep.subr.bf16.mxu0 0
        %1852 = vmatpush2.bf16.msra.mxu0 0
        %1853 = vmatprep.mubr.bf16.mxu0 0
        %1854 = vmatmul.mubr.bf16.gmra.mxu0 %v1805
        %v1855 = vpop.f32.mrf.mxu0
        %v1856 = vadd.f32 %v1696, %v1855
        %v1857 = vpop.f32.mrf.mxu0
        %v1858 = vadd.f32 %v1696, %v1857
        %v1859 = vpop.f32.mrf.mxu0
        %v1860 = vadd.f32 %v1701, %v1859
        %v1861 = vpop.f32.mrf.mxu0
        %v1862 = vadd.f32 %v1701, %v1861
        %1863 = vmatprep.mubr.bf16.mxu0 0
        %1864 = vmatmul.mubr.bf16.gmra.mxu0 %v1806
        %v1865 = vpop.f32.mrf.mxu0
        %v1866 = vadd.f32 %v1706, %v1865
        %v1867 = vpop.f32.mrf.mxu0
        %v1868 = vadd.f32 %v1706, %v1867
        %v1869 = vpop.f32.mrf.mxu0
        %v1870 = vadd.f32 %v1711, %v1869
        %v1871 = vpop.f32.mrf.mxu0
        %v1872 = vadd.f32 %v1711, %v1871
        %1873 = vmatprep.mubr.bf16.mxu0 0
        %1874 = vmatmul.mubr.bf16.gmra.mxu0 %v1807
        %v1875 = vpop.f32.mrf.mxu0
        %v1876 = vadd.f32 %v1716, %v1875
        %v1877 = vpop.f32.mrf.mxu0
        %v1878 = vadd.f32 %v1716, %v1877
        %v1879 = vpop.f32.mrf.mxu0
        %v1880 = vadd.f32 %v1721, %v1879
        %v1881 = vpop.f32.mrf.mxu0
        %v1882 = vadd.f32 %v1721, %v1881
        %1883 = vmatprep.mubr.bf16.mxu0 0
        %1884 = vmatmul.mubr.bf16.gmra.mxu0 %v1808
        %v1885 = vpop.f32.mrf.mxu0
        %v1886 = vadd.f32 %v1726, %v1885
        %v1887 = vpop.f32.mrf.mxu0
        %v1888 = vadd.f32 %v1726, %v1887
        %v1889 = vpop.f32.mrf.mxu0
        %v1890 = vadd.f32 %v1731, %v1889
        %v1891 = vpop.f32.mrf.mxu0
        %v1892 = vadd.f32 %v1731, %v1891
        %1893 = vmatprep.mubr.bf16.mxu0 0
        %1894 = vmatmul.mubr.bf16.gmra.mxu0 %v1809
        %v1895 = vpop.f32.mrf.mxu0
        %v1896 = vadd.f32 %v1736, %v1895
        %v1897 = vpop.f32.mrf.mxu0
        %v1898 = vadd.f32 %v1736, %v1897
        %v1899 = vpop.f32.mrf.mxu0
        %v1900 = vadd.f32 %v1741, %v1899
        %v1901 = vpop.f32.mrf.mxu0
        %v1902 = vadd.f32 %v1741, %v1901
        %1903 = vmatprep.mubr.bf16.mxu0 0
        %1904 = vmatmul.mubr.bf16.gmra.mxu0 %v1810
        %v1905 = vpop.f32.mrf.mxu0
        %v1906 = vadd.f32 %v1746, %v1905
        %v1907 = vpop.f32.mrf.mxu0
        %v1908 = vadd.f32 %v1746, %v1907
        %v1909 = vpop.f32.mrf.mxu0
        %v1910 = vadd.f32 %v1751, %v1909
        %v1911 = vpop.f32.mrf.mxu0
        %v1912 = vadd.f32 %v1751, %v1911
        %1913 = vmatprep.mubr.bf16.mxu0 0
        %1914 = vmatmul.mubr.bf16.gmra.mxu0 %v1811
        %v1915 = vpop.f32.mrf.mxu0
        %v1916 = vadd.f32 %v1756, %v1915
        %v1917 = vpop.f32.mrf.mxu0
        %v1918 = vadd.f32 %v1756, %v1917
        %v1919 = vpop.f32.mrf.mxu0
        %v1920 = vadd.f32 %v1761, %v1919
        %v1921 = vpop.f32.mrf.mxu0
        %v1922 = vadd.f32 %v1761, %v1921
        %1923 = vmatprep.mubr.bf16.mxu0 0
        %1924 = vmatmul.mubr.bf16.gmra.mxu0 %v1812
        %v1925 = vpop.f32.mrf.mxu0
        %v1926 = vadd.f32 %v1766, %v1925
        %v1927 = vpop.f32.mrf.mxu0
        %v1928 = vadd.f32 %v1766, %v1927
        %v1929 = vpop.f32.mrf.mxu0
        %v1930 = vadd.f32 %v1771, %v1929
        %v1931 = vpop.f32.mrf.mxu0
        %v1932 = vadd.f32 %v1771, %v1931
        %1933 = vdwg.mxu0
        %v1934 = vmax.f32 %v1856, 0.0
        %v1935 = vmax.f32 %v1858, 0.0
        %v1936 = vmax.f32 %v1860, 0.0
        %v1937 = vmax.f32 %v1862, 0.0
        %v1938 = vmax.f32 %v1866, 0.0
        %v1939 = vmax.f32 %v1868, 0.0
        %v1940 = vmax.f32 %v1870, 0.0
        %v1941 = vmax.f32 %v1872, 0.0
        %v1942 = vmax.f32 %v1876, 0.0
        %v1943 = vmax.f32 %v1878, 0.0
        %v1944 = vmax.f32 %v1880, 0.0
        %v1945 = vmax.f32 %v1882, 0.0
        %v1946 = vmax.f32 %v1886, 0.0
        %v1947 = vmax.f32 %v1888, 0.0
        %v1948 = vmax.f32 %v1890, 0.0
        %v1949 = vmax.f32 %v1892, 0.0
        %v1950 = vmax.f32 %v1896, 0.0
        %v1951 = vmax.f32 %v1898, 0.0
        %v1952 = vmax.f32 %v1900, 0.0
        %v1953 = vmax.f32 %v1902, 0.0
        %v1954 = vmax.f32 %v1906, 0.0
        %v1955 = vmax.f32 %v1908, 0.0
        %v1956 = vmax.f32 %v1910, 0.0
        %v1957 = vmax.f32 %v1912, 0.0
        %v1958 = vmax.f32 %v1916, 0.0
        %v1959 = vmax.f32 %v1918, 0.0
        %v1960 = vmax.f32 %v1920, 0.0
        %v1961 = vmax.f32 %v1922, 0.0
        %v1962 = vmax.f32 %v1926, 0.0
        %v1963 = vmax.f32 %v1928, 0.0
        %v1964 = vmax.f32 %v1930, 0.0
        %v1965 = vmax.f32 %v1932, 0.0
        %v1966 = vpack.c.bf16 %v1936, %v1934
        %v1967 = vpack.c.bf16 %v1937, %v1935
        %v1968 = vpack.c.bf16 %v1940, %v1938
        %v1969 = vpack.c.bf16 %v1941, %v1939
        %v1970 = vpack.c.bf16 %v1944, %v1942
        %v1971 = vpack.c.bf16 %v1945, %v1943
        %v1972 = vpack.c.bf16 %v1948, %v1946
        %v1973 = vpack.c.bf16 %v1949, %v1947
        %v1974 = vpack.c.bf16 %v1952, %v1950
        %v1975 = vpack.c.bf16 %v1953, %v1951
        %v1976 = vpack.c.bf16 %v1956, %v1954
        %v1977 = vpack.c.bf16 %v1957, %v1955
        %v1978 = vpack.c.bf16 %v1960, %v1958
        %v1979 = vpack.c.bf16 %v1961, %v1959
        %v1980 = vpack.c.bf16 %v1964, %v1962
        %v1981 = vpack.c.bf16 %v1965, %v1963
        %v1982 = vld [vmem:[%s6] sm:$0xf]
        %v1983 = vld [vmem:[%s8] sm:$0xff]
        %1985 = vset.pattern.permute.xlu0 0
        %1986 = vperm.xlu0 %1985, %v1983
        %v1987 = vpop.permute.xlu0 %1986
        %1989 = vmatprep.subr.bf16.mxu0 %v1981
        %1990 = vmatpush1.bf16.msra.mxu0 %v1980
        %1991 = vmatprep.subr.bf16.mxu0 %v1979
        %1992 = vmatpush1.bf16.msra.mxu0 %v1978
        %1993 = vmatprep.subr.bf16.mxu0 %v1977
        %1994 = vmatpush1.bf16.msra.mxu0 %v1976
        %1995 = vmatprep.subr.bf16.mxu0 %v1975
        %1996 = vmatpush1.bf16.msra.mxu0 %v1974
        %1997 = vmatprep.subr.bf16.mxu0 %v1973
        %1998 = vmatpush1.bf16.msra.mxu0 %v1972
        %1999 = vmatprep.subr.bf16.mxu0 %v1971
        %2000 = vmatpush1.bf16.msra.mxu0 %v1970
        %2001 = vmatprep.subr.bf16.mxu0 %v1969
        %2002 = vmatpush1.bf16.msra.mxu0 %v1968
        %2003 = vmatprep.subr.bf16.mxu0 %v1967
        %2004 = vmatpush1.bf16.msra.mxu0 %v1966
        %2005 = vmatprep.subr.bf16.mxu0 0
        %2006 = vmatpush2.bf16.msra.mxu0 0
        %2007 = vmatprep.subr.bf16.mxu0 0
        %2008 = vmatpush2.bf16.msra.mxu0 0
        %2009 = vmatprep.subr.bf16.mxu0 0
        %2010 = vmatpush2.bf16.msra.mxu0 0
        %2011 = vmatprep.subr.bf16.mxu0 0
        %2012 = vmatpush2.bf16.msra.mxu0 0
        %2013 = vmatprep.subr.bf16.mxu0 0
        %2014 = vmatpush2.bf16.msra.mxu0 0
        %2015 = vmatprep.subr.bf16.mxu0 0
        %2016 = vmatpush2.bf16.msra.mxu0 0
        %2017 = vmatprep.subr.bf16.mxu0 0
        %2018 = vmatpush2.bf16.msra.mxu0 0
        %2019 = vmatprep.subr.bf16.mxu0 0
        %2020 = vmatpush2.bf16.msra.mxu0 0
        %2021 = vmatprep.mubr.bf16.mxu0 0
        %2022 = vmatmul.mubr.bf16.gmra.mxu0 %v1982
        %v2023 = vpop.f32.mrf.mxu0
        %v2024 = vadd.f32 %v1987, %v2023
        %v2025 = vpop.f32.mrf.mxu0
        %v2026 = vadd.f32 %v1987, %v2025
        %v2027 = vpop.f32.mrf.mxu0
        %v2028 = vpop.f32.mrf.mxu0
        %2029 = vdwg.mxu0
        %2030 = vst [vmem:[%s326] sm:$0xff] %v2024
        %2031 = vst [vmem:[%s326 + $0x8] sm:$0xff] %v2026
        %s2032 = sand.u32 %s225, 1
        %s2033 = scalar_lea.sflag [#allocation3], %s2032
        %s2034 = sand.u32 %s225, 1
        %s2035 = smul.addr %s2034, 16
        %s2036 = scalar_lea.vmem [#allocation2], %s2035
        // Predicated region
        $region57: #{tpu_custom_call.1} parent=55 // pred_check
          %p2037 = pneg %p235
        $region58: #{tpu_custom_call.1} parent=55 // pred_check_branch
          %2039 = sbr.rel (%p2037) target = $region60
        $region59: #{tpu_custom_call.1} parent=55 // pred_region
          %s2040 = smul.u32 2, %s23
          %s2042 = ssub.s32 256, 256
          %2043 = vsyncadd %s2033, %s2042
          %s2044 = smul.addr %s2040, 128
          %s2045 = scalar_lea.hbm %s9, %s2044
          %s2047 = sshll.u32 %s2036, 4
          %s2048 = int_to_ptr.vmem [resolvable:$true] %s2047
          %2050 = dma.vmem_to_hbm [thread:$0]  %s2048, 256, %s2045, %s2033
        $region60: #{tpu_custom_call.1} parent=55 // pred_fallthru
          _
      $region56: #{tpu_custom_call.1} parent=5 // pred_fallthru
        _
      %p2051 = scmp.le.s32.totalorder 2, %s18
      // Predicated region
      $region61: #{tpu_custom_call.1} parent=5 // pred_check
        %p2052 = pneg %p2051
      $region62: #{tpu_custom_call.1} parent=5 // pred_check_branch
        %2054 = sbr.rel (%p2052) target = $region64
      $region63: #{tpu_custom_call.1} parent=5 // pred_region
        %s2055 = ssub.s32 %s18, 2
        // Predicated region
        $region65: #{tpu_custom_call.1} parent=63 // pred_check
          %p2056 = pneg %p241
        $region66: #{tpu_custom_call.1} parent=63 // pred_check_branch
          %2058 = sbr.rel (%p2056) target = $region68
        $region67: #{tpu_custom_call.1} parent=63 // pred_region
          %s2059 = sand.u32 %s226, 1
          %s2060 = scalar_lea.sflag [#allocation3], %s2059
          %s2061 = sand.u32 %s226, 1
          %s2062 = smul.addr %s2061, 16
          %s2063 = scalar_lea.vmem [#allocation2], %s2062
          %2064 = dma.done %s2060, 256
        $region68: #{tpu_custom_call.1} parent=63 // pred_fallthru
          _
      $region64: #{tpu_custom_call.1} parent=5 // pred_fallthru
        _
    $region6: #{tpu_custom_call.1} parent=1 // loop_footer
      %s22 = sadd.s32 1, %s18
    $region7: #{tpu_custom_call.1} parent=1 // loop_footer_branch
      %17 = sbr.rel target = $region3
    $region8: #{tpu_custom_call.1} parent=1 // loop_exit
      _
    %2065 = vsyncpa [#allocation3], 1
    %s2066 = scalar_lea.sflag [#allocation3], 1
    %2067 = vsyncpa %s2066, 1

</llo_original>
